<compile_context>
chip_gen: v7x
topology: tpu7x:2x2x1
jax: 0.10.0
libtpu: 0.0.40
codegen_flags: <defaults>
</compile_context>

<pallas_src>
import functools

import jax
import jax.numpy as jnp
from jax.experimental import pallas as pl
from jax.experimental.pallas import tpu as pltpu


# --------------------- kernel 1a: fused patch-embed+head -------------------

def _head_fused_kernel(patches_ref, wcomb_ref, bcomb_ref, logits_ref):
    """logits (C, TBN) = w_comb (C, P) @ patches (P, TBN) + b_comb (C, 1)."""
    logits_ref[...] = (jnp.dot(wcomb_ref[...], patches_ref[...],
                               preferred_element_type=jnp.float32)
                       + bcomb_ref[...])


# --------------------- kernel 1b: unfused patch-embed+head -----------------

def _embed_head_kernel(patches_ref, wp_t_ref, bp_ref, wh_t_ref, bh_ref,
                       logits_ref):
    """Two chained matmuls per token tile (for a non-stub encoder path)."""
    feat = jnp.dot(wp_t_ref[...], patches_ref[...],
                   preferred_element_type=jnp.float32) + bp_ref[...]   # (D, TBN)
    feat = feat.astype(wh_t_ref.dtype)
    logits_ref[...] = (jnp.dot(wh_t_ref[...], feat,
                               preferred_element_type=jnp.float32)
                       + bh_ref[...])                                  # (C, TBN)


# ------------------ kernel 2: separable bilinear upsample ------------------

def _upsample_kernel(lhs_ref, ry_ref, rx_t_ref, out_ref):
    """Per-(batch, OH-tile) separable bilinear upsample.

    lhs:  (H, C*W)   logits for this batch, channel folded into the lane axis
                     (resident in VMEM across all OH tiles of the batch)
    ry:   (TOH, H)   height resize weights for this OH tile
    rx_t: (W, OW)    width resize weights (resident)
    out:  (C, TOH, OW)  lane axis = OW (dense, unmasked stores)
    """
    H, CW = lhs_ref.shape
    TOH = ry_ref.shape[0]
    W, OW = rx_t_ref.shape
    C = CW // W

    # Height pass: one big matmul, M = TOH rows.
    b = jnp.dot(ry_ref[...], lhs_ref[...],
                preferred_element_type=jnp.float32)                    # (TOH, C*W)
    # Small relayout (TOH, C, W) -> (C*TOH, W) done BEFORE the width expansion
    # (cheapest place: W, not OW, on the lane axis).
    b = jnp.transpose(b.reshape(TOH, C, W), (1, 0, 2)).reshape(C * TOH, W)
    # Width pass: one big matmul, M = C*TOH rows, lane axis = OW.
    o = jnp.dot(b.astype(rx_t_ref.dtype), rx_t_ref[...],
                preferred_element_type=jnp.float32)                    # (C*TOH, OW)
    out_ref[...] = o.reshape(C, TOH, OW).astype(out_ref.dtype)


# ------------------------------ host helpers --------------------------------

def _bilinear_resize_matrix(in_size, out_size):
    """1-D weights matching F.interpolate(bilinear, align_corners=False).
    NOTE: matches PyTorch for upsampling; downsampling (out < in) uses
    different (area-style) weights in PyTorch and is not covered here."""
    o = jnp.arange(out_size, dtype=jnp.float32)
    src = (o + 0.5) * (in_size / out_size) - 0.5
    src = jnp.maximum(src, 0.0)
    i0 = jnp.clip(jnp.floor(src).astype(jnp.int32), 0, in_size - 1)
    i1 = jnp.minimum(i0 + 1, in_size - 1)
    frac = src - i0.astype(jnp.float32)
    cols = jnp.arange(in_size, dtype=jnp.int32)
    w0 = (cols[None, :] == i0[:, None]).astype(jnp.float32) * (1.0 - frac)[:, None]
    w1 = (cols[None, :] == i1[:, None]).astype(jnp.float32) * frac[:, None]
    return w0 + w1                                          # (out_size, in_size)


def _largest_aligned_divisor(n, target, align):
    """Largest t <= target with t % align == 0 and n % t == 0, else n."""
    if n <= target:
        return n
    t = (target // align) * align
    while t >= align:
        if n % t == 0:
            return t
        t -= align
    return n


# ------------------------------ host wrapper --------------------------------

def simple_segmentation_decoder(x, params, *, image_size, patch_size,
                                num_classes,
                                compute_dtype=jnp.float32,
                                out_dtype=jnp.float32,
                                fuse_stub_head=True):
    # compute_dtype=jnp.bfloat16 is the faster MXU path on real TPU hardware,
    # but the CPU/interpret DotThunk does not support bf16 x bf16 = f32, so the
    # portable default keeps f32 operands (accumulation is f32 either way).
    B, cin, s, _ = x.shape
    assert s == image_size and image_size % patch_size == 0
    H = W = image_size // patch_size
    N = H * W
    BN = B * N
    P = cin * patch_size * patch_size
    D = params["wp"].shape[1]
    C = num_classes
    OH = OW = image_size

    # --- glue: NCHW image -> channel-major patches (P, B*N), token order (b,h,w)
    patches_t = (x.reshape(B, cin, H, patch_size, W, patch_size)
                  .transpose(1, 3, 5, 0, 2, 4)
                  .reshape(P, BN)).astype(compute_dtype)

    # ---- kernel 1: embed + head, tiled over the token axis -----------------
    TBN = _largest_aligned_divisor(BN, 2048, 128)
    grid1 = (BN // TBN,)

    if fuse_stub_head:
        # Stub encoder has no nonlinearity between patch-embed and head, so
        # fold the head into the embedding on the host (kept in f32 -> at
        # least as accurate as the chained-matmul version).
        w_comb = (params["wp"].astype(jnp.float32)
                  @ params["wh"].astype(jnp.float32)).T.astype(compute_dtype)   # (C, P)
        b_comb = (params["bp"].astype(jnp.float32)
                  @ params["wh"].astype(jnp.float32)
                  + params["bh"].astype(jnp.float32)).reshape(C, 1)             # (C, 1)
        kernel1 = _head_fused_kernel
        operands1 = (patches_t, w_comb, b_comb)
        in_specs1 = [
            pl.BlockSpec((P, TBN), lambda i: (0, i)),
            pl.BlockSpec((C, P), lambda i: (0, 0)),
            pl.BlockSpec((C, 1), lambda i: (0, 0)),
        ]
        flops1 = 2 * BN * P * C
        bytes1 = (patches_t.size * patches_t.dtype.itemsize
                  + w_comb.size * w_comb.dtype.itemsize + C * 4 + C * BN * 4)
    else:
        wp_t = params["wp"].T.astype(compute_dtype)              # (D, P)
        wh_t = params["wh"].T.astype(compute_dtype)              # (C, D)
        bp = params["bp"].reshape(D, 1).astype(jnp.float32)      # (D, 1)
        bh = params["bh"].reshape(C, 1).astype(jnp.float32)      # (C, 1)
        kernel1 = _embed_head_kernel
        operands1 = (patches_t, wp_t, bp, wh_t, bh)
        in_specs1 = [
            pl.BlockSpec((P, TBN), lambda i: (0, i)),
            pl.BlockSpec((D, P), lambda i: (0, 0)),
            pl.BlockSpec((D, 1), lambda i: (0, 0)),
            pl.BlockSpec((C, D), lambda i: (0, 0)),
            pl.BlockSpec((C, 1), lambda i: (0, 0)),
        ]
        flops1 = 2 * BN * (P * D + D * C)
        bytes1 = (patches_t.size * patches_t.dtype.itemsize
                  + (D * P + C * D) * wp_t.dtype.itemsize
                  + (D + C) * 4 + C * BN * 4)

    logits_t = pl.pallas_call(
        kernel1,
        out_shape=jax.ShapeDtypeStruct((C, BN), jnp.float32),
        grid=grid1,
        in_specs=in_specs1,
        out_specs=pl.BlockSpec((C, TBN), lambda i: (0, i)),
        compiler_params=pltpu.CompilerParams(
            dimension_semantics=("parallel",),
            vmem_limit_bytes=64 * 1024 * 1024),
        cost_estimate=pl.CostEstimate(flops=flops1, transcendentals=0,
                                      bytes_accessed=bytes1),
    )(*operands1)                                            # (C, B*H*W) f32

    # --- glue: tiny logits relayout (C, B*H*W) -> (B, H, C*W) ---------------
    lhs_t = (logits_t.reshape(C, B, H, W)
             .transpose(1, 2, 0, 3)
             .reshape(B, H, C * W)).astype(compute_dtype)

    # --- constant separable bilinear weights (align_corners=False) ----------
    ry = _bilinear_resize_matrix(H, OH).astype(compute_dtype)        # (OH, H)
    rx_t = _bilinear_resize_matrix(W, OW).T.astype(compute_dtype)    # (W, OW)

    # ---- kernel 2: separable upsample, tiled over (B, OH tiles) ------------
    TOH = _largest_aligned_divisor(OH, 256, 8)
    grid2 = (B, OH // TOH)

    cost2 = pl.CostEstimate(
        flops=2 * B * (OH * H * C * W + C * OH * W * OW),
        transcendentals=0,
        bytes_accessed=(lhs_t.size * lhs_t.dtype.itemsize
                        + ry.size * ry.dtype.itemsize
                        + rx_t.size * rx_t.dtype.itemsize
                        + B * C * OH * OW * jnp.dtype(out_dtype).itemsize))
    out = pl.pallas_call(
        _upsample_kernel,
        out_shape=jax.ShapeDtypeStruct((B, C, OH, OW), out_dtype),
        grid=grid2,
        in_specs=[
            # per-batch logits slab, resident across all OH tiles of the batch
            pl.BlockSpec((None, H, C * W), lambda b, t: (b, 0, 0)),
            # OH-tile slice of the height resize weights
            pl.BlockSpec((TOH, H), lambda b, t: (t, 0)),
            # width resize weights, resident
            pl.BlockSpec((W, OW), lambda b, t: (0, 0)),
        ],
        out_specs=pl.BlockSpec((None, C, TOH, OW), lambda b, t: (b, 0, t, 0)),
        compiler_params=pltpu.CompilerParams(
            dimension_semantics=("parallel", "parallel"),
            vmem_limit_bytes=64 * 1024 * 1024),
        cost_estimate=cost2,
    )(lhs_t, ry, rx_t)

    return out                                               # (B, C, OH, OW) NCHW


# ------------------------------- reference ---------------------------------

def _reference(x, params, *, image_size, patch_size, num_classes):
    B, cin = x.shape[:2]
    H = W = image_size // patch_size
    P = cin * patch_size * patch_size
    patches = (x.reshape(B, cin, H, patch_size, W, patch_size)
                .transpose(0, 2, 4, 1, 3, 5).reshape(B, H * W, P))
    feat = patches @ params["wp"] + params["bp"]
    logits = feat @ params["wh"] + params["bh"]
    logits = logits.reshape(B, H, W, num_classes).transpose(0, 3, 1, 2)
    ry = _bilinear_resize_matrix(H, image_size)
    rx = _bilinear_resize_matrix(W, image_size)
    return jnp.einsum("yh,bchw,xw->bcyx", ry, logits, rx)


if __name__ == "__main__":
    # Small shapes consistent with the module's forward pass.
    B, cin = 2, 4
    image_size, patch_size = 16, 4          # H = W = 4, upsample 4x4 -> 16x16
    embed_dim, num_classes = 32, 21
    P = cin * patch_size * patch_size

    key = jax.random.PRNGKey(0)
    kx, kwp, kbp, kwh, kbh = jax.random.split(key, 5)
    x = jax.random.normal(kx, (B, cin, image_size, image_size), jnp.float32)

    params = {
        # encoder patch-embed Conv2d(cin, D, k=ps, s=ps) as (P, D) linear
        "wp": 0.02 * jax.random.normal(kwp, (P, embed_dim), jnp.float32),
        "bp": 0.01 * jax.random.normal(kbp, (1, embed_dim), jnp.float32),
        # head Conv2d(D, num_classes, kernel_size=1) as (D, C) linear
        "wh": 0.02 * jax.random.normal(kwh, (embed_dim, num_classes), jnp.float32),
        "bh": 0.01 * jax.random.normal(kbh, (1, num_classes), jnp.float32),
    }

    fwd = jax.jit(functools.partial(
        simple_segmentation_decoder, image_size=image_size,
        patch_size=patch_size, num_classes=num_classes))
    out = jax.block_until_ready(fwd(x, params))

    assert out.shape == (B, num_classes, image_size, image_size), out.shape
    assert out.dtype == jnp.float32

    ref = _reference(x, params, image_size=image_size, patch_size=patch_size,
                     num_classes=num_classes)
    assert jnp.allclose(out, ref, atol=1e-3, rtol=1e-3), float(
        jnp.max(jnp.abs(out - ref)))

    # Also exercise the unfused (non-stub) head path once.
    out2 = jax.block_until_ready(jax.jit(functools.partial(
        simple_segmentation_decoder, image_size=image_size,
        patch_size=patch_size, num_classes=num_classes,
        fuse_stub_head=False))(x, params))
    assert jnp.allclose(out2, ref, atol=1e-3, rtol=1e-3), float(
        jnp.max(jnp.abs(out2 - ref)))

    print("KERNEL_OK")
</pallas_src>

<mosaic_0001>
module attributes {stable_mosaic.version = 11 : i64} {
  func.func @_head_fused_kernel(%arg0: i32, %arg1: memref<64x32xf32, #tpu.memory_space<vmem>>, %arg2: memref<21x64xf32, #tpu.memory_space<vmem>>, %arg3: memref<21x1xf32, #tpu.memory_space<vmem>>, %arg4: memref<21x32xf32, #tpu.memory_space<vmem>>) attributes {dimension_semantics = [#tpu.dimension_semantics<parallel>], iteration_bounds = array<i64: 1>, scalar_prefetch = 0 : i64, scratch_operands = 0 : i64, tpu.core_type = #tpu.core_type<tc>, window_params = [{transform_indices = @transform_0, window_bounds = array<i64: 64, 32>}, {pipeline_mode = #tpu.pipeline_mode<synchronous>, transform_indices = @transform_1, window_bounds = array<i64: 21, 64>}, {pipeline_mode = #tpu.pipeline_mode<synchronous>, transform_indices = @transform_2, window_bounds = array<i64: 21, 1>}, {transform_indices = @transform_3, window_bounds = array<i64: 21, 32>}]} {
    %c0 = arith.constant 0 : index
    %c0_0 = arith.constant 0 : index
    %0 = vector.load %arg2[%c0, %c0_0] : memref<21x64xf32, #tpu.memory_space<vmem>>, vector<21x64xf32>
    %c0_1 = arith.constant 0 : index
    %c0_2 = arith.constant 0 : index
    %1 = vector.load %arg1[%c0_1, %c0_2] : memref<64x32xf32, #tpu.memory_space<vmem>>, vector<64x32xf32>
    %cst = arith.constant dense<0.000000e+00> : vector<21x32xf32>
    %2 = tpu.matmul %0, %1, %cst {dimension_numbers = #tpu.dot_dimension_numbers<[1], [0], [0], [1], [0, 0, 1, 1], [], []>} : vector<21x64xf32>, vector<64x32xf32>, vector<21x32xf32> -> vector<21x32xf32>
    %c0_3 = arith.constant 0 : index
    %c0_4 = arith.constant 0 : index
    %3 = vector.load %arg3[%c0_3, %c0_4] : memref<21x1xf32, #tpu.memory_space<vmem>>, vector<21x1xf32>
    %4 = vector.broadcast %3 : vector<21x1xf32> to vector<21x32xf32>
    %5 = arith.addf %2, %4 : vector<21x32xf32>
    %c0_5 = arith.constant 0 : index
    %c0_6 = arith.constant 0 : index
    %6 = vector.load %arg4[%c0_5, %c0_6] : memref<21x32xf32, #tpu.memory_space<vmem>>, vector<21x32xf32>
    tpu.vector_store %arg4[%c0_5, %c0_6], %5 {strides = array<i32>} : memref<21x32xf32, #tpu.memory_space<vmem>>, vector<21x32xf32>,
    return
  }
  func.func @transform_0(%arg0: i32) -> (i32, i32) {
    %c0_i32 = arith.constant 0 : i32
    %c0_i32_0 = arith.constant 0 : i32
    return %c0_i32, %arg0 : i32, i32
  }
  func.func @transform_1(%arg0: i32) -> (i32, i32) {
    %c0_i32 = arith.constant 0 : i32
    %c0_i32_0 = arith.constant 0 : i32
    %c0_i32_1 = arith.constant 0 : i32
    return %c0_i32, %c0_i32_0 : i32, i32
  }
  func.func @transform_2(%arg0: i32) -> (i32, i32) {
    %c0_i32 = arith.constant 0 : i32
    %c0_i32_0 = arith.constant 0 : i32
    %c0_i32_1 = arith.constant 0 : i32
    return %c0_i32, %c0_i32_0 : i32, i32
  }
  func.func @transform_3(%arg0: i32) -> (i32, i32) {
    %c0_i32 = arith.constant 0 : i32
    %c0_i32_0 = arith.constant 0 : i32
    return %c0_i32, %arg0 : i32, i32
  }
}

module attributes {stable_mosaic.version = 11 : i64} {
  func.func @_upsample_kernel(%arg0: i32, %arg1: i32, %arg2: memref<1x4x84xf32, #tpu.memory_space<vmem>>, %arg3: memref<16x4xf32, #tpu.memory_space<vmem>>, %arg4: memref<4x16xf32, #tpu.memory_space<vmem>>, %arg5: memref<1x21x16x16xf32, #tpu.memory_space<vmem>>) attributes {dimension_semantics = [#tpu.dimension_semantics<parallel>, #tpu.dimension_semantics<parallel>], iteration_bounds = array<i64: 2, 1>, scalar_prefetch = 0 : i64, scratch_operands = 0 : i64, tpu.core_type = #tpu.core_type<tc>, window_params = [{transform_indices = @transform_0, window_bounds = array<i64: 1, 4, 84>}, {transform_indices = @transform_1, window_bounds = array<i64: 16, 4>}, {pipeline_mode = #tpu.pipeline_mode<synchronous>, transform_indices = @transform_2, window_bounds = array<i64: 4, 16>}, {transform_indices = @transform_3, window_bounds = array<i64: 1, 21, 16, 16>}]} {
    %c0 = arith.constant 0 : index
    %c0_0 = arith.constant 0 : index
    %0 = vector.load %arg3[%c0, %c0_0] : memref<16x4xf32, #tpu.memory_space<vmem>>, vector<16x4xf32>
    %c0_1 = arith.constant 0 : index
    %c0_2 = arith.constant 0 : index
    %c0_3 = arith.constant 0 : index
    %1 = vector.load %arg2[%c0_1, %c0_2, %c0_3] : memref<1x4x84xf32, #tpu.memory_space<vmem>>, vector<1x4x84xf32>
    %2 = vector.shape_cast %1 : vector<1x4x84xf32> to vector<4x84xf32>
    %cst = arith.constant dense<0.000000e+00> : vector<16x84xf32>
    %3 = tpu.matmul %0, %2, %cst {dimension_numbers = #tpu.dot_dimension_numbers<[1], [0], [0], [1], [0, 0, 1, 1], [], []>} : vector<16x4xf32>, vector<4x84xf32>, vector<16x84xf32> -> vector<16x84xf32>
    %4 = vector.shape_cast %3 : vector<16x84xf32> to vector<16x21x4xf32>
    %5 = tpu.transpose %4, [1, 0, 2] : vector<16x21x4xf32> -> vector<21x16x4xf32>
    %6 = vector.shape_cast %5 : vector<21x16x4xf32> to vector<336x4xf32>
    %c0_4 = arith.constant 0 : index
    %c0_5 = arith.constant 0 : index
    %7 = vector.load %arg4[%c0_4, %c0_5] : memref<4x16xf32, #tpu.memory_space<vmem>>, vector<4x16xf32>
    %cst_6 = arith.constant dense<0.000000e+00> : vector<336x16xf32>
    %8 = tpu.matmul %6, %7, %cst_6 {dimension_numbers = #tpu.dot_dimension_numbers<[1], [0], [0], [1], [0, 0, 1, 1], [], []>} : vector<336x4xf32>, vector<4x16xf32>, vector<336x16xf32> -> vector<336x16xf32>
    %9 = vector.shape_cast %8 : vector<336x16xf32> to vector<21x16x16xf32>
    %c0_7 = arith.constant 0 : index
    %c0_8 = arith.constant 0 : index
    %c0_9 = arith.constant 0 : index
    %c0_10 = arith.constant 0 : index
    %10 = vector.load %arg5[%c0_7, %c0_8, %c0_9, %c0_10] : memref<1x21x16x16xf32, #tpu.memory_space<vmem>>, vector<1x21x16x16xf32>
    %11 = vector.shape_cast %10 : vector<1x21x16x16xf32> to vector<21x16x16xf32>
    %12 = vector.shape_cast %9 : vector<21x16x16xf32> to vector<1x21x16x16xf32>
    tpu.vector_store %arg5[%c0_7, %c0_8, %c0_9, %c0_10], %12 {strides = array<i32>} : memref<1x21x16x16xf32, #tpu.memory_space<vmem>>, vector<1x21x16x16xf32>,
    return
  }
  func.func @transform_0(%arg0: i32, %arg1: i32) -> (i32, i32, i32) {
    %c0_i32 = arith.constant 0 : i32
    %c0_i32_0 = arith.constant 0 : i32
    %c0_i32_1 = arith.constant 0 : i32
    return %arg0, %c0_i32, %c0_i32_0 : i32, i32, i32
  }
  func.func @transform_1(%arg0: i32, %arg1: i32) -> (i32, i32) {
    %c0_i32 = arith.constant 0 : i32
    %c0_i32_0 = arith.constant 0 : i32
    return %arg1, %c0_i32 : i32, i32
  }
  func.func @transform_2(%arg0: i32, %arg1: i32) -> (i32, i32) {
    %c0_i32 = arith.constant 0 : i32
    %c0_i32_0 = arith.constant 0 : i32
    %c0_i32_1 = arith.constant 0 : i32
    return %c0_i32, %c0_i32_0 : i32, i32
  }
  func.func @transform_3(%arg0: i32, %arg1: i32) -> (i32, i32, i32, i32) {
    %c0_i32 = arith.constant 0 : i32
    %c0_i32_0 = arith.constant 0 : i32
    %c0_i32_1 = arith.constant 0 : i32
    return %arg0, %c0_i32, %arg1, %c0_i32_0 : i32, i32, i32, i32
  }
}

</mosaic_0001>

<llo_original>
// kernel: simple_segmentation_decoder.2
$region0: #{simple_segmentation_decoder.2}
  #allocation0 [shape = 'u32[]', space=smem, size = 0x4, offset = 0x4, fixed_abs, tag = 'smem constant byte address 0x4 - core index']
  #allocation1 [shape = 'u32[144,128]{1,0:T(1,128)}', space=vmem, size = 0x12000, scoped, tag = 'internal scratch']
  %s0 = inlined_call_operand.hbm [shape: f32[64,32], index: 0, kind: input, shape index: {}]
  %s1 = inlined_call_operand.hbm [shape: f32[21,64], index: 1, kind: input, shape index: {}]
  %s2 = inlined_call_operand.hbm [shape: f32[21,1], index: 2, kind: input, shape index: {}]
  %s3 = inlined_call_operand.hbm [shape: f32[21,32], index: 3, kind: output, shape index: {}]
  %s4 = sld [smem:[#allocation0]]
  $region34: #{simple_segmentation_decoder.2} parent=0
    _
  %s6 = ssub.s32 1, %s4
  %s7 = scalar_select 0, %s6, %s4
  $region1: #{simple_segmentation_decoder.2} parent=0
    #allocation2 [shape = 'u8[32768]{0}', space=vmem, size = 0x8000, scoped, tag = 'input window, operand 0, single buffered']
    #allocation3 [shape = 's32[1]{0}', space=sflag, size = 0x4, scoped, tag = 'scoped memory for simple_segmentation_decoder.2']
    #allocation4 [shape = 's32[1]{0}', space=sflag, size = 0x4, scoped, tag = 'scoped memory for simple_segmentation_decoder.2']
    #allocation5 [shape = 'u8[12288]{0}', space=vmem, size = 0x3000, scoped, tag = 'input window, operand 1, single buffered']
    #allocation6 [shape = 's32[1]{0}', space=sflag, size = 0x4, scoped, tag = 'scoped memory for simple_segmentation_decoder.2']
    #allocation7 [shape = 'u8[12288]{0}', space=vmem, size = 0x3000, scoped, tag = 'input window, operand 2, single buffered']
    #allocation8 [shape = 'u8[12288]{0}', space=vmem, size = 0x3000, scoped, tag = 'output window, operand 0, single buffered']
    %8 = vsyncpa [#allocation3], 0
    %9 = vsyncpa [#allocation6], 0
    %10 = vsyncpa [#allocation4], 0
    // Predicated region
    $region2: #{simple_segmentation_decoder.2} parent=1 // pred_check
      _
    $region3: #{simple_segmentation_decoder.2} parent=1 // pred_check_branch
      %12 = sbr.rel (0) target = $region5
    $region4: #{simple_segmentation_decoder.2} parent=1 // pred_region
      %s14 = ssub.s32 1024, 1024
      %15 = vsyncadd [#allocation3], %s14
      %s16 = sshll.u32 [#allocation2], 4
      %s17 = int_to_ptr.vmem [resolvable:$true] %s16
      %22 = dma.hbm_to_vmem [thread:$0]  %s0, 1024, %s17, [#allocation3], 128, 128, 8
    $region5: #{simple_segmentation_decoder.2} parent=1 // pred_fallthru
      _
    // Predicated region
    $region6: #{simple_segmentation_decoder.2} parent=1 // pred_check
      _
    $region7: #{simple_segmentation_decoder.2} parent=1 // pred_check_branch
      %24 = sbr.rel (0) target = $region9
    $region8: #{simple_segmentation_decoder.2} parent=1 // pred_region
      %s26 = ssub.s32 384, 384
      %27 = vsyncadd [#allocation6], %s26
      %s28 = sshll.u32 [#allocation5], 4
      %s29 = int_to_ptr.vmem [resolvable:$true] %s28
      %34 = dma.hbm_to_vmem [thread:$0]  %s1, 384, %s29, [#allocation6], 128, 128, 8
    $region9: #{simple_segmentation_decoder.2} parent=1 // pred_fallthru
      _
    // Predicated region
    $region10: #{simple_segmentation_decoder.2} parent=1 // pred_check
      _
    $region11: #{simple_segmentation_decoder.2} parent=1 // pred_check_branch
      %36 = sbr.rel (0) target = $region13
    $region12: #{simple_segmentation_decoder.2} parent=1 // pred_region
      %s38 = ssub.s32 384, 384
      %39 = vsyncadd [#allocation6], %s38
      %s40 = sshll.u32 [#allocation7], 4
      %s41 = int_to_ptr.vmem [resolvable:$true] %s40
      %46 = dma.hbm_to_vmem [thread:$0]  %s2, 384, %s41, [#allocation6], 128, 128, 8
    $region13: #{simple_segmentation_decoder.2} parent=1 // pred_fallthru
      _
    // Predicated region
    $region14: #{simple_segmentation_decoder.2} parent=1 // pred_check
      _
    $region15: #{simple_segmentation_decoder.2} parent=1 // pred_check_branch
      %48 = sbr.rel (0) target = $region17
    $region16: #{simple_segmentation_decoder.2} parent=1 // pred_region
      %49 = dma.done [#allocation3], 1024
    $region17: #{simple_segmentation_decoder.2} parent=1 // pred_fallthru
      _
    // Predicated region
    $region18: #{simple_segmentation_decoder.2} parent=1 // pred_check
      _
    $region19: #{simple_segmentation_decoder.2} parent=1 // pred_check_branch
      %51 = sbr.rel (0) target = $region21
    $region20: #{simple_segmentation_decoder.2} parent=1 // pred_region
      %52 = dma.done [#allocation6], 384
    $region21: #{simple_segmentation_decoder.2} parent=1 // pred_fallthru
      _
    // Predicated region
    $region22: #{simple_segmentation_decoder.2} parent=1 // pred_check
      _
    $region23: #{simple_segmentation_decoder.2} parent=1 // pred_check_branch
      %54 = sbr.rel (0) target = $region25
    $region24: #{simple_segmentation_decoder.2} parent=1 // pred_region
      %55 = dma.done [#allocation6], 384
    $region25: #{simple_segmentation_decoder.2} parent=1 // pred_fallthru
      _
    %v56 = vld [vmem:[#allocation5] sm:$0xff]
    %v57 = vld [vmem:[#allocation5 + $0x8] sm:$0xff]
    %v58 = vld [vmem:[#allocation5 + $0x10] sm:$0x1f]
    %v59 = vld [vmem:[#allocation2] sm:$0xff]
    %v60 = vld [vmem:[#allocation2 + $0x8] sm:$0xff]
    %v61 = vld [vmem:[#allocation2 + $0x10] sm:$0xff]
    %v62 = vld [vmem:[#allocation2 + $0x18] sm:$0xff]
    %v63 = vld [vmem:[#allocation2 + $0x20] sm:$0xff]
    %v64 = vld [vmem:[#allocation2 + $0x28] sm:$0xff]
    %v65 = vld [vmem:[#allocation2 + $0x30] sm:$0xff]
    %v66 = vld [vmem:[#allocation2 + $0x38] sm:$0xff]
    %v67 = vld [vmem:[#allocation7] sm:$0xff]
    %v68 = vld [vmem:[#allocation7 + $0x8] sm:$0xff]
    %v69 = vld [vmem:[#allocation7 + $0x10] sm:$0x1f]
    %71 = vset.pattern.permute.xlu0 0
    %72 = vperm.xlu0 %71, %v67
    %v73 = vpop.permute.xlu0 %72
    %76 = vset.pattern.permute.xlu0 0
    %77 = vperm.xlu0 %76, %v68
    %v78 = vpop.permute.xlu0 %77
    %81 = vset.pattern.permute.xlu0 0
    %82 = vperm.xlu0 %81, %v69
    %v83 = vpop.permute.xlu0 %82
    %vm85 = vcmask 523264
    %v87 = vsel %vm85, %v56, 0
    %v90 = vsel %vm85, %v57, 0
    %v93 = vsel %vm85, %v58, 0
    %95 = vmatprep.subr.mxu0 0.0
    %96 = vmatpush1.msra.mxu0 %v59
    %97 = vmatprep.subr.mxu0 0.0
    %98 = vmatpush1.msra.mxu0 %v60
    %99 = vmatprep.subr.mxu0 0.0
    %100 = vmatpush1.msra.mxu0 %v61
    %101 = vmatprep.subr.mxu0 0.0
    %102 = vmatpush1.msra.mxu0 %v62
    %103 = vmatprep.subr.mxu0 0.0
    %104 = vmatpush1.msra.mxu0 %v63
    %105 = vmatprep.subr.mxu0 0.0
    %106 = vmatpush1.msra.mxu0 %v64
    %107 = vmatprep.subr.mxu0 0.0
    %108 = vmatpush1.msra.mxu0 %v65
    %109 = vmatprep.subr.mxu0 0.0
    %110 = vmatpush1.msra.mxu0 %v66
    %111 = vmatprep.subr.mxu0 0.0
    %112 = vmatpush1.msra.mxu0 0.0
    %113 = vmatprep.subr.mxu0 0.0
    %114 = vmatpush1.msra.mxu0 0.0
    %115 = vmatprep.subr.mxu0 0.0
    %116 = vmatpush1.msra.mxu0 0.0
    %117 = vmatprep.subr.mxu0 0.0
    %118 = vmatpush1.msra.mxu0 0.0
    %119 = vmatprep.subr.mxu0 0.0
    %120 = vmatpush1.msra.mxu0 0.0
    %121 = vmatprep.subr.mxu0 0.0
    %122 = vmatpush1.msra.mxu0 0.0
    %123 = vmatprep.subr.mxu0 0.0
    %124 = vmatpush1.msra.mxu0 0.0
    %125 = vmatprep.subr.mxu0 0.0
    %126 = vmatpush1.msra.mxu0 0.0
    %127 = vmatprep.subr.mxu0 0.0
    %128 = vmatpush1.msra.mxu0 0.0
    %129 = vmatprep.subr.mxu0 0.0
    %130 = vmatpush1.msra.mxu0 0.0
    %131 = vmatprep.subr.mxu0 0.0
    %132 = vmatpush1.msra.mxu0 0.0
    %133 = vmatprep.subr.mxu0 0.0
    %134 = vmatpush1.msra.mxu0 0.0
    %135 = vmatprep.subr.mxu0 0.0
    %136 = vmatpush1.msra.mxu0 0.0
    %137 = vmatprep.subr.mxu0 0.0
    %138 = vmatpush1.msra.mxu0 0.0
    %139 = vmatprep.subr.mxu0 0.0
    %140 = vmatpush1.msra.mxu0 0.0
    %141 = vmatprep.subr.mxu0 0.0
    %142 = vmatpush1.msra.mxu0 0.0
    %143 = vmatprep.subr.mxu0 0.0
    %144 = vmatpush1.msra.mxu0 0.0
    %145 = vmatprep.subr.mxu0 0.0
    %146 = vmatpush1.msra.mxu0 0.0
    %147 = vmatprep.subr.mxu0 0.0
    %148 = vmatpush1.msra.mxu0 0.0
    %149 = vmatprep.subr.mxu0 0.0
    %150 = vmatpush1.msra.mxu0 0.0
    %151 = vmatprep.subr.mxu0 0.0
    %152 = vmatpush1.msra.mxu0 0.0
    %153 = vmatprep.subr.mxu0 0.0
    %154 = vmatpush1.msra.mxu0 0.0
    %155 = vmatprep.subr.mxu0 0.0
    %156 = vmatpush1.msra.mxu0 0.0
    %157 = vmatprep.subr.mxu0 0.0
    %158 = vmatpush1.msra.mxu0 0.0
    %159 = vmatprep.mubr.f32.mxu0 0.0
    %160 = vmatmul.mubr.f32.gmra.mrb[0].mxu0 %v87
    %v161 = vpop.f32.mrb[0].mxu0
    %v162 = vadd.f32 %v73, %v161
    %v163 = vpop.f32.mrb[0].mxu0
    %164 = vmatprep.mubr.f32.mxu0 0.0
    %165 = vmatmul.mubr.f32.gmra.mrb[0].mxu0 %v90
    %v166 = vpop.f32.mrb[0].mxu0
    %v167 = vadd.f32 %v78, %v166
    %v168 = vpop.f32.mrb[0].mxu0
    %169 = vmatprep.mubr.f32.mxu0 0.0
    %170 = vmatmul.mubr.f32.gmra.mrb[0].mxu0 %v93
    %v171 = vpop.f32.mrb[0].mxu0
    %v172 = vadd.f32 %v83, %v171
    %v173 = vpop.f32.mrb[0].mxu0
    %174 = vdwg.mxu0
    %vm175 = vcmask 261120
    %176 = vst.msk [vmem:[#allocation8] sm:$0xff] %vm175, %v162
    %177 = vst.msk [vmem:[#allocation8 + $0x8] sm:$0xff] %vm175, %v167
    %vm178 = vcmask 258048
    %179 = vst.msk [vmem:[#allocation8 + $0x10] sm:$0x1f] %vm178, %v172
    // Predicated region
    $region26: #{simple_segmentation_decoder.2} parent=1 // pred_check
      _
    $region27: #{simple_segmentation_decoder.2} parent=1 // pred_check_branch
      %181 = sbr.rel (0) target = $region29
    $region28: #{simple_segmentation_decoder.2} parent=1 // pred_region
      %s183 = ssub.s32 384, 384
      %184 = vsyncadd [#allocation4], %s183
      %s185 = sshll.u32 [#allocation8], 4
      %s186 = int_to_ptr.vmem [resolvable:$true] %s185
      %191 = dma.vmem_to_hbm [thread:$0]  %s186, 384, %s3, [#allocation4], 128, 128, 8
    $region29: #{simple_segmentation_decoder.2} parent=1 // pred_fallthru
      _
    // Predicated region
    $region30: #{simple_segmentation_decoder.2} parent=1 // pred_check
      _
    $region31: #{simple_segmentation_decoder.2} parent=1 // pred_check_branch
      %193 = sbr.rel (0) target = $region33
    $region32: #{simple_segmentation_decoder.2} parent=1 // pred_region
      %194 = dma.done [#allocation4], 384
    $region33: #{simple_segmentation_decoder.2} parent=1 // pred_fallthru
      _
    %195 = vsyncpa [#allocation3], 1
    %196 = vsyncpa [#allocation6], 1
    %197 = vsyncpa [#allocation4], 1

// kernel: simple_segmentation_decoder.3
$region0: #{simple_segmentation_decoder.3}
  #allocation0 [shape = 'u32[]', space=smem, size = 0x4, offset = 0x4, fixed_abs, tag = 'smem constant byte address 0x4 - core index']
  #allocation1 [shape = 'u32[144,128]{1,0:T(1,128)}', space=vmem, size = 0x12000, scoped, tag = 'internal scratch']
  %s0 = inlined_call_operand.hbm [shape: f32[2,4,84], index: 0, kind: input, shape index: {}]
  %s1 = inlined_call_operand.hbm [shape: f32[16,4], index: 1, kind: input, shape index: {}]
  %s2 = inlined_call_operand.hbm [shape: f32[4,16], index: 2, kind: input, shape index: {}]
  %s3 = inlined_call_operand.hbm [shape: f32[2,21,16,16], index: 3, kind: output, shape index: {}]
  %s4 = sld [smem:[#allocation0]]
  $region57: #{simple_segmentation_decoder.3} parent=0
    _
  %s6 = ssub.s32 1, %s4
  %s7 = scalar_select 0, %s6, %s4
  $region1: #{simple_segmentation_decoder.3} parent=0
    #allocation2 [shape = 'u8[4096]{0}', space=vmem, size = 0x1000, scoped, tag = 'input window, operand 0']
    #allocation3 [shape = 's32[2]{0}', space=sflag, size = 0x8, scoped, tag = 'scoped memory for simple_segmentation_decoder.3']
    #allocation4 [shape = 's32[2]{0}', space=sflag, size = 0x8, scoped, tag = 'scoped memory for simple_segmentation_decoder.3']
    #allocation5 [shape = 'u8[8192]{0}', space=vmem, size = 0x2000, scoped, tag = 'input window, operand 1, single buffered']
    #allocation6 [shape = 's32[1]{0}', space=sflag, size = 0x4, scoped, tag = 'scoped memory for simple_segmentation_decoder.3']
    #allocation7 [shape = 'u8[2048]{0}', space=vmem, size = 0x800, scoped, tag = 'input window, operand 2, single buffered']
    #allocation8 [shape = 'u8[344064]{0}', space=vmem, size = 0x54000, scoped, tag = 'output window, operand 0']
    %8 = vsyncpa [#allocation3], 0
    %s9 = scalar_lea.sflag [#allocation3], 1
    %10 = vsyncpa %s9, 0
    %11 = vsyncpa [#allocation6], 0
    %12 = vsyncpa [#allocation4], 0
    %s13 = scalar_lea.sflag [#allocation4], 1
    %14 = vsyncpa %s13, 0
    loop: start=0, step=1, limit=4
    $region2: #{simple_segmentation_decoder.3} parent=1 // loop_pre_header
      _
    $region3: #{simple_segmentation_decoder.3} parent=1 // loop_header
      %s16 = sphi 0, %s20
      %p17 = scmp.ge.s32.totalorder %s16, 4
      %s23 = sphi 0, %s35
      %s24 = sphi 0, %s31
      %s25 = sphi 0, %s23
      %s26 = sphi 0, %s24
      %s27 = sphi 0, %s25
      %s28 = sphi 0, %s26
      %s38 = sphi 0, %s40
      %s41 = sphi 0, %s38
      %s42 = sphi 0, %s41
      %s58 = sphi 0, %s42
      %s64 = sphi 0, %s66
      %s67 = sphi 0, %s64
      %s68 = sphi 0, %s67
      %s84 = sphi 0, %s68
      %s88 = sphi 0, %s88
      %s90 = sphi 0, %s88
      %s91 = sphi 0, %s90
      %s105 = sphi 0, %s91
      %s113 = sphi 0, %s115
      %s116 = sphi 0, %s113
      %s117 = sphi 0, %s116
      %s133 = sphi 0, %s117
    $region4: #{simple_segmentation_decoder.3} parent=1 // loop_header_branch
      %19 = sbr.rel (%p17) target = $region8
    $region5: #{simple_segmentation_decoder.3} parent=1 // loop_body
      %s21 = ssub.s32 %s16, 1
      %s22 = ssub.s32 %s16, 2
      %s29 = sadd.s32 1, %s24
      %p30 = scmp.ge.s32.totalorder %s29, 1
      %s31 = scalar_select %p30, 0, %s29
      %s32 = sadd.s32 1, %s23
      %s33 = scalar_select %p30, %s32, %s23
      %p34 = scmp.ge.s32.totalorder %s33, 2
      %s35 = scalar_select %p34, 0, %s33
      %s36 = ssub.s32 %s23, %s35
      %p37 = scmp.eq.s32.totalorder %s36, 0
      %s39 = sadd.s32 %s38, 1
      %s40 = scalar_select %p37, %s38, %s39
      %p43 = pneg %p37
      %p44 = scmp.eq.s32.totalorder %s16, 1
      %p45 = por %p43, %p44
      %p46 = scmp.ne.s32.totalorder %s38, %s41
      %p47 = scmp.eq.s32.totalorder %s16, 0
      %p48 = por %p46, %p47
      %p49 = scmp.ne.s32.totalorder %s38, %s41
      %p50 = scmp.eq.s32.totalorder %s21, 1
      %p51 = por %p49, %p50
      %p52 = scmp.ne.s32.totalorder %s41, %s42
      %p53 = scmp.eq.s32.totalorder %s21, 0
      %p54 = por %p52, %p53
      %p55 = scmp.ne.s32.totalorder %s41, %s42
      %p56 = scmp.eq.s32.totalorder %s22, 1
      %p57 = por %p55, %p56
      %p59 = scmp.ne.s32.totalorder %s42, %s58
      %p60 = scmp.eq.s32.totalorder %s22, 0
      %p61 = por %p59, %p60
      %s62 = ssub.s32 %s24, %s31
      %p63 = scmp.eq.s32.totalorder %s62, 0
      %s65 = sadd.s32 %s64, 1
      %s66 = scalar_select %p63, %s64, %s65
      %p69 = pneg %p63
      %p70 = scmp.eq.s32.totalorder %s16, 1
      %p71 = por %p69, %p70
      %p72 = scmp.ne.s32.totalorder %s64, %s67
      %p73 = scmp.eq.s32.totalorder %s16, 0
      %p74 = por %p72, %p73
      %p75 = scmp.ne.s32.totalorder %s64, %s67
      %p76 = scmp.eq.s32.totalorder %s21, 1
      %p77 = por %p75, %p76
      %p78 = scmp.ne.s32.totalorder %s67, %s68
      %p79 = scmp.eq.s32.totalorder %s21, 0
      %p80 = por %p78, %p79
      %p81 = scmp.ne.s32.totalorder %s67, %s68
      %p82 = scmp.eq.s32.totalorder %s22, 1
      %p83 = por %p81, %p82
      %p85 = scmp.ne.s32.totalorder %s68, %s84
      %p86 = scmp.eq.s32.totalorder %s22, 0
      %p87 = por %p85, %p86
      %s89 = sadd.s32 %s88, 1
      %p92 = scmp.eq.s32.totalorder %s16, 1
      %p93 = scmp.ne.s32.totalorder %s88, %s90
      %p94 = scmp.eq.s32.totalorder %s16, 0
      %p95 = por %p93, %p94
      %p96 = scmp.ne.s32.totalorder %s88, %s90
      %p97 = scmp.eq.s32.totalorder %s21, 1
      %p98 = por %p96, %p97
      %p99 = scmp.ne.s32.totalorder %s90, %s91
      %p100 = scmp.eq.s32.totalorder %s21, 0
      %p101 = por %p99, %p100
      %p102 = scmp.ne.s32.totalorder %s90, %s91
      %p103 = scmp.eq.s32.totalorder %s22, 1
      %p104 = por %p102, %p103
      %p106 = scmp.ne.s32.totalorder %s91, %s105
      %p107 = scmp.eq.s32.totalorder %s22, 0
      %p108 = por %p106, %p107
      %s109 = ssub.s32 %s23, %s35
      %s110 = ssub.s32 %s24, %s31
      %s111 = sor.u32 %s109, %s110
      %p112 = scmp.eq.s32.totalorder %s111, 0
      %s114 = sadd.s32 %s113, 1
      %s115 = scalar_select %p112, %s113, %s114
      %p118 = pneg %p112
      %p119 = scmp.eq.s32.totalorder %s16, 1
      %p120 = por %p118, %p119
      %p121 = scmp.ne.s32.totalorder %s113, %s116
      %p122 = scmp.eq.s32.totalorder %s16, 0
      %p123 = por %p121, %p122
      %p124 = scmp.ne.s32.totalorder %s113, %s116
      %p125 = scmp.eq.s32.totalorder %s21, 1
      %p126 = por %p124, %p125
      %p127 = scmp.ne.s32.totalorder %s116, %s117
      %p128 = scmp.eq.s32.totalorder %s21, 0
      %p129 = por %p127, %p128
      %p130 = scmp.ne.s32.totalorder %s116, %s117
      %p131 = scmp.eq.s32.totalorder %s22, 1
      %p132 = por %p130, %p131
      %p134 = scmp.ne.s32.totalorder %s117, %s133
      %p135 = scmp.eq.s32.totalorder %s22, 0
      %p136 = por %p134, %p135
      %p137 = scmp.le.s32.totalorder 1, %s16
      %p138 = scmp.lt.s32.totalorder %s16, 3
      %p139 = pnand %p137, %p138
      %p140 = pneg %p139
      // Predicated region
      $region9: #{simple_segmentation_decoder.3} parent=5 // pred_check
        _
      $region10: #{simple_segmentation_decoder.3} parent=5 // pred_check_branch
        %142 = sbr.rel (%p139) target = $region12
      $region11: #{simple_segmentation_decoder.3} parent=5 // pred_region
        %s143 = ssub.s32 %s16, 1
        // Predicated region
        $region13: #{simple_segmentation_decoder.3} parent=11 // pred_check
          %p144 = pneg %p80
        $region14: #{simple_segmentation_decoder.3} parent=11 // pred_check_branch
          %146 = sbr.rel (%p144) target = $region16
        $region15: #{simple_segmentation_decoder.3} parent=11 // pred_region
          %s147 = smul.u32 2, %s26
          %s149 = ssub.s32 256, 256
          %150 = vsyncadd [#allocation6], %s149
          %s151 = smul.addr %s147, 128
          %s152 = scalar_lea.hbm %s1, %s151
          %s153 = sshll.u32 [#allocation5], 4
          %s154 = int_to_ptr.vmem [resolvable:$true] %s153
          %159 = dma.hbm_to_vmem [thread:$0]  %s152, 256, %s154, [#allocation6], 128, 128, 8
        $region16: #{simple_segmentation_decoder.3} parent=11 // pred_fallthru
          _
        // Predicated region
        $region17: #{simple_segmentation_decoder.3} parent=11 // pred_check
          %p160 = pneg %p101
        $region18: #{simple_segmentation_decoder.3} parent=11 // pred_check_branch
          %162 = sbr.rel (%p160) target = $region20
        $region19: #{simple_segmentation_decoder.3} parent=11 // pred_region
          %s164 = ssub.s32 64, 64
          %165 = vsyncadd [#allocation6], %s164
          %s167 = sshll.u32 [#allocation7], 4
          %s168 = int_to_ptr.vmem [resolvable:$true] %s167
          %170 = dma.hbm_to_vmem [thread:$0]  %s2, 64, %s168, [#allocation6]
        $region20: #{simple_segmentation_decoder.3} parent=11 // pred_fallthru
          _
      $region12: #{simple_segmentation_decoder.3} parent=5 // pred_fallthru
        _
      %p171 = scmp.lt.s32.totalorder %s16, 2
      // Predicated region
      $region21: #{simple_segmentation_decoder.3} parent=5 // pred_check
        %p172 = pneg %p171
      $region22: #{simple_segmentation_decoder.3} parent=5 // pred_check_branch
        %174 = sbr.rel (%p172) target = $region24
      $region23: #{simple_segmentation_decoder.3} parent=5 // pred_region
        // Predicated region
        $region25: #{simple_segmentation_decoder.3} parent=23 // pred_check
          %p175 = pneg %p48
        $region26: #{simple_segmentation_decoder.3} parent=23 // pred_check_branch
          %177 = sbr.rel (%p175) target = $region28
        $region27: #{simple_segmentation_decoder.3} parent=23 // pred_region
          %s178 = sand.u32 %s38, 1
          %s179 = scalar_lea.sflag [#allocation3], %s178
          %s180 = sand.u32 %s38, 1
          %s181 = smul.addr %s180, 4
          %s182 = scalar_lea.vmem [#allocation2], %s181
          %s184 = ssub.s32 64, 64
          %185 = vsyncadd %s179, %s184
          %s186 = smul.addr %s23, 64
          %s187 = scalar_lea.hbm %s0, %s186
          %s189 = sshll.u32 %s182, 4
          %s190 = int_to_ptr.vmem [resolvable:$true] %s189
          %192 = dma.hbm_to_vmem [thread:$0]  %s187, 64, %s190, %s179
        $region28: #{simple_segmentation_decoder.3} parent=23 // pred_fallthru
          _
      $region24: #{simple_segmentation_decoder.3} parent=5 // pred_fallthru
        _
      %p193 = scmp.le.s32.totalorder 1, %s16
      %p194 = scmp.lt.s32.totalorder %s16, 3
      %p195 = pnand %p193, %p194
      %p196 = pneg %p195
      // Predicated region
      $region29: #{simple_segmentation_decoder.3} parent=5 // pred_check
        _
      $region30: #{simple_segmentation_decoder.3} parent=5 // pred_check_branch
        %198 = sbr.rel (%p195) target = $region32
      $region31: #{simple_segmentation_decoder.3} parent=5 // pred_region
        %s199 = ssub.s32 %s16, 1
        %s200 = sand.u32 %s41, 1
        %s201 = scalar_lea.sflag [#allocation3], %s200
        %s202 = sand.u32 %s41, 1
        %s203 = smul.addr %s202, 4
        %s204 = scalar_lea.vmem [#allocation2], %s203
        // Predicated region
        $region33: #{simple_segmentation_decoder.3} parent=31 // pred_check
          %p205 = pneg %p54
        $region34: #{simple_segmentation_decoder.3} parent=31 // pred_check_branch
          %207 = sbr.rel (%p205) target = $region36
        $region35: #{simple_segmentation_decoder.3} parent=31 // pred_region
          %208 = dma.done %s201, 64
        $region36: #{simple_segmentation_decoder.3} parent=31 // pred_fallthru
          _
        // Predicated region
        $region37: #{simple_segmentation_decoder.3} parent=31 // pred_check
          %p209 = pneg %p80
        $region38: #{simple_segmentation_decoder.3} parent=31 // pred_check_branch
          %211 = sbr.rel (%p209) target = $region40
        $region39: #{simple_segmentation_decoder.3} parent=31 // pred_region
          %212 = dma.done [#allocation6], 256
        $region40: #{simple_segmentation_decoder.3} parent=31 // pred_fallthru
          _
        // Predicated region
        $region41: #{simple_segmentation_decoder.3} parent=31 // pred_check
          %p213 = pneg %p101
        $region42: #{simple_segmentation_decoder.3} parent=31 // pred_check_branch
          %215 = sbr.rel (%p213) target = $region44
        $region43: #{simple_segmentation_decoder.3} parent=31 // pred_region
          %216 = dma.done [#allocation6], 64
        $region44: #{simple_segmentation_decoder.3} parent=31 // pred_fallthru
          _
        %s217 = sand.u32 %s41, 1
        %s218 = scalar_lea.sflag [#allocation3], %s217
        %s219 = sand.u32 %s41, 1
        %s220 = smul.addr %s219, 4
        %s221 = scalar_lea.vmem [#allocation2], %s220
        %p222 = pneg %p54
        %p223 = pneg %p51
        %p224 = pneg %p80
        %p225 = pneg %p77
        %p226 = pneg %p101
        %p227 = pneg %p98
        %p228 = pneg %p129
        %p229 = pneg %p126
        %s230 = sand.u32 %s116, 1
        %s231 = scalar_lea.sflag [#allocation4], %s230
        %s232 = sand.u32 %s116, 1
        %s233 = smul.addr %s232, 336
        %s234 = scalar_lea.vmem [#allocation8], %s233
        %s235 = smul.u32 2, %s26
        %s236 = smul.u32 2, %s26
        %v237 = vld [vmem:[#allocation5] sm:$0xff]
        %v238 = vld [vmem:[#allocation5 + $0x8] sm:$0xff]
        %v239 = vld [vmem:[%s204] sm:$0xf]
        %vm240 = vcmask 31744
        %v242 = vsel %vm240, %v237, 0
        %v245 = vsel %vm240, %v238, 0
        %vm247 = vcmask 1043456
        %v249 = vsel %vm247, %v239, 0
        %251 = vmatprep.subr.mxu0 0.0
        %252 = vmatpush1.msra.mxu0 %v249
        %253 = vmatprep.subr.mxu0 0.0
        %254 = vmatpush1.msra.mxu0 0.0
        %255 = vmatprep.subr.mxu0 0.0
        %256 = vmatpush1.msra.mxu0 0.0
        %257 = vmatprep.subr.mxu0 0.0
        %258 = vmatpush1.msra.mxu0 0.0
        %259 = vmatprep.subr.mxu0 0.0
        %260 = vmatpush1.msra.mxu0 0.0
        %261 = vmatprep.subr.mxu0 0.0
        %262 = vmatpush1.msra.mxu0 0.0
        %263 = vmatprep.subr.mxu0 0.0
        %264 = vmatpush1.msra.mxu0 0.0
        %265 = vmatprep.subr.mxu0 0.0
        %266 = vmatpush1.msra.mxu0 0.0
        %267 = vmatprep.subr.mxu0 0.0
        %268 = vmatpush1.msra.mxu0 0.0
        %269 = vmatprep.subr.mxu0 0.0
        %270 = vmatpush1.msra.mxu0 0.0
        %271 = vmatprep.subr.mxu0 0.0
        %272 = vmatpush1.msra.mxu0 0.0
        %273 = vmatprep.subr.mxu0 0.0
        %274 = vmatpush1.msra.mxu0 0.0
        %275 = vmatprep.subr.mxu0 0.0
        %276 = vmatpush1.msra.mxu0 0.0
        %277 = vmatprep.subr.mxu0 0.0
        %278 = vmatpush1.msra.mxu0 0.0
        %279 = vmatprep.subr.mxu0 0.0
        %280 = vmatpush1.msra.mxu0 0.0
        %281 = vmatprep.subr.mxu0 0.0
        %282 = vmatpush1.msra.mxu0 0.0
        %283 = vmatprep.subr.mxu0 0.0
        %284 = vmatpush1.msra.mxu0 0.0
        %285 = vmatprep.subr.mxu0 0.0
        %286 = vmatpush1.msra.mxu0 0.0
        %287 = vmatprep.subr.mxu0 0.0
        %288 = vmatpush1.msra.mxu0 0.0
        %289 = vmatprep.subr.mxu0 0.0
        %290 = vmatpush1.msra.mxu0 0.0
        %291 = vmatprep.subr.mxu0 0.0
        %292 = vmatpush1.msra.mxu0 0.0
        %293 = vmatprep.subr.mxu0 0.0
        %294 = vmatpush1.msra.mxu0 0.0
        %295 = vmatprep.subr.mxu0 0.0
        %296 = vmatpush1.msra.mxu0 0.0
        %297 = vmatprep.subr.mxu0 0.0
        %298 = vmatpush1.msra.mxu0 0.0
        %299 = vmatprep.subr.mxu0 0.0
        %300 = vmatpush1.msra.mxu0 0.0
        %301 = vmatprep.subr.mxu0 0.0
        %302 = vmatpush1.msra.mxu0 0.0
        %303 = vmatprep.subr.mxu0 0.0
        %304 = vmatpush1.msra.mxu0 0.0
        %305 = vmatprep.subr.mxu0 0.0
        %306 = vmatpush1.msra.mxu0 0.0
        %307 = vmatprep.subr.mxu0 0.0
        %308 = vmatpush1.msra.mxu0 0.0
        %309 = vmatprep.subr.mxu0 0.0
        %310 = vmatpush1.msra.mxu0 0.0
        %311 = vmatprep.subr.mxu0 0.0
        %312 = vmatpush1.msra.mxu0 0.0
        %313 = vmatprep.subr.mxu0 0.0
        %314 = vmatpush1.msra.mxu0 0.0
        %315 = vmatprep.mubr.f32.mxu0 0.0
        %316 = vmatmul.mubr.f32.gmra.mrb[0].mxu0 %v242
        %v317 = vpop.f32.mrb[0].mxu0
        %v318 = vadd.f32 0.0, %v317
        %v319 = vpop.f32.mrb[0].mxu0
        %320 = vmatprep.mubr.f32.mxu0 0.0
        %321 = vmatmul.mubr.f32.gmra.mrb[0].mxu0 %v245
        %v322 = vpop.f32.mrb[0].mxu0
        %v323 = vadd.f32 0.0, %v322
        %v324 = vpop.f32.mrb[0].mxu0
        %325 = vdwg.mxu0
        %328 = vrot.lane.b32.xlu0 %v318, 124
        %v329 = vpop.permute.xlu0 %328
        %330 = vrot.lane.b32.xlu0 %v323, 124
        %v331 = vpop.permute.xlu0 %330
        %334 = vrot.lane.b32.xlu0 %v318, 120
        %v335 = vpop.permute.xlu0 %334
        %336 = vrot.lane.b32.xlu0 %v323, 120
        %v337 = vpop.permute.xlu0 %336
        %340 = vrot.lane.b32.xlu0 %v318, 116
        %v341 = vpop.permute.xlu0 %340
        %342 = vrot.lane.b32.xlu0 %v323, 116
        %v343 = vpop.permute.xlu0 %342
        %346 = vrot.lane.b32.xlu0 %v318, 112
        %v347 = vpop.permute.xlu0 %346
        %348 = vrot.lane.b32.xlu0 %v323, 112
        %v349 = vpop.permute.xlu0 %348
        %352 = vrot.lane.b32.xlu0 %v318, 108
        %v353 = vpop.permute.xlu0 %352
        %354 = vrot.lane.b32.xlu0 %v323, 108
        %v355 = vpop.permute.xlu0 %354
        %358 = vrot.lane.b32.xlu0 %v318, 104
        %v359 = vpop.permute.xlu0 %358
        %360 = vrot.lane.b32.xlu0 %v323, 104
        %v361 = vpop.permute.xlu0 %360
        %364 = vrot.lane.b32.xlu0 %v318, 100
        %v365 = vpop.permute.xlu0 %364
        %366 = vrot.lane.b32.xlu0 %v323, 100
        %v367 = vpop.permute.xlu0 %366
        %370 = vrot.lane.b32.xlu0 %v318, 96
        %v371 = vpop.permute.xlu0 %370
        %372 = vrot.lane.b32.xlu0 %v323, 96
        %v373 = vpop.permute.xlu0 %372
        %376 = vrot.lane.b32.xlu0 %v318, 92
        %v377 = vpop.permute.xlu0 %376
        %378 = vrot.lane.b32.xlu0 %v323, 92
        %v379 = vpop.permute.xlu0 %378
        %382 = vrot.lane.b32.xlu0 %v318, 88
        %v383 = vpop.permute.xlu0 %382
        %384 = vrot.lane.b32.xlu0 %v323, 88
        %v385 = vpop.permute.xlu0 %384
        %388 = vrot.lane.b32.xlu0 %v318, 84
        %v389 = vpop.permute.xlu0 %388
        %390 = vrot.lane.b32.xlu0 %v323, 84
        %v391 = vpop.permute.xlu0 %390
        %394 = vrot.lane.b32.xlu0 %v318, 80
        %v395 = vpop.permute.xlu0 %394
        %396 = vrot.lane.b32.xlu0 %v323, 80
        %v397 = vpop.permute.xlu0 %396
        %400 = vrot.lane.b32.xlu0 %v318, 76
        %v401 = vpop.permute.xlu0 %400
        %402 = vrot.lane.b32.xlu0 %v323, 76
        %v403 = vpop.permute.xlu0 %402
        %406 = vrot.lane.b32.xlu0 %v318, 72
        %v407 = vpop.permute.xlu0 %406
        %408 = vrot.lane.b32.xlu0 %v323, 72
        %v409 = vpop.permute.xlu0 %408
        %412 = vrot.lane.b32.xlu0 %v318, 68
        %v413 = vpop.permute.xlu0 %412
        %414 = vrot.lane.b32.xlu0 %v323, 68
        %v415 = vpop.permute.xlu0 %414
        %418 = vrot.lane.b32.xlu0 %v318, 64
        %v419 = vpop.permute.xlu0 %418
        %420 = vrot.lane.b32.xlu0 %v323, 64
        %v421 = vpop.permute.xlu0 %420
        %424 = vrot.lane.b32.xlu0 %v318, 60
        %v425 = vpop.permute.xlu0 %424
        %426 = vrot.lane.b32.xlu0 %v323, 60
        %v427 = vpop.permute.xlu0 %426
        %430 = vrot.lane.b32.xlu0 %v318, 56
        %v431 = vpop.permute.xlu0 %430
        %432 = vrot.lane.b32.xlu0 %v323, 56
        %v433 = vpop.permute.xlu0 %432
        %436 = vrot.lane.b32.xlu0 %v318, 52
        %v437 = vpop.permute.xlu0 %436
        %438 = vrot.lane.b32.xlu0 %v323, 52
        %v439 = vpop.permute.xlu0 %438
        %442 = vrot.lane.b32.xlu0 %v318, 48
        %v443 = vpop.permute.xlu0 %442
        %444 = vrot.lane.b32.xlu0 %v323, 48
        %v445 = vpop.permute.xlu0 %444
        %v448 = vcombine.low %v318, %v335
        %v449 = vcombine.high %v318, %v335
        %v451 = vunpack.c.l.s4 1983009808
        %v452 = vunpack.c.0.s8 %v451
        %v453 = vlaneseq
        %v454 = vshrl.u32 %v453, 7
        %v455 = vsub.s32 %v452, %v454
        %v456 = vrot.slane %v448, %v455
        %v458 = vunpack.c.l.s4 1983009808
        %v459 = vunpack.c.0.s8 %v458
        %v460 = vlaneseq
        %v461 = vshrl.u32 %v460, 7
        %v462 = vsub.s32 %v459, %v461
        %v463 = vrot.slane %v449, %v462
        %v464 = vcombine.low %v329, %v341
        %v465 = vcombine.high %v329, %v341
        %v467 = vunpack.c.l.s4 1983009808
        %v468 = vunpack.c.0.s8 %v467
        %v469 = vlaneseq
        %v470 = vshrl.u32 %v469, 7
        %v471 = vsub.s32 %v468, %v470
        %v472 = vrot.slane %v464, %v471
        %v474 = vunpack.c.l.s4 1983009808
        %v475 = vunpack.c.0.s8 %v474
        %v476 = vlaneseq
        %v477 = vshrl.u32 %v476, 7
        %v478 = vsub.s32 %v475, %v477
        %v479 = vrot.slane %v465, %v478
        %v480 = vcombine.low %v347, %v359
        %v481 = vcombine.high %v347, %v359
        %v483 = vunpack.c.l.s4 1983009808
        %v484 = vunpack.c.0.s8 %v483
        %v485 = vlaneseq
        %v486 = vshrl.u32 %v485, 7
        %v487 = vsub.s32 %v484, %v486
        %v488 = vrot.slane %v480, %v487
        %v490 = vunpack.c.l.s4 1983009808
        %v491 = vunpack.c.0.s8 %v490
        %v492 = vlaneseq
        %v493 = vshrl.u32 %v492, 7
        %v494 = vsub.s32 %v491, %v493
        %v495 = vrot.slane %v481, %v494
        %v496 = vcombine.low %v353, %v365
        %v497 = vcombine.high %v353, %v365
        %v499 = vunpack.c.l.s4 1983009808
        %v500 = vunpack.c.0.s8 %v499
        %v501 = vlaneseq
        %v502 = vshrl.u32 %v501, 7
        %v503 = vsub.s32 %v500, %v502
        %v504 = vrot.slane %v496, %v503
        %v506 = vunpack.c.l.s4 1983009808
        %v507 = vunpack.c.0.s8 %v506
        %v508 = vlaneseq
        %v509 = vshrl.u32 %v508, 7
        %v510 = vsub.s32 %v507, %v509
        %v511 = vrot.slane %v497, %v510
        %v512 = vcombine.low %v456, %v472
        %v513 = vcombine.high %v456, %v472
        %v515 = vunpack.c.l.s4 1934713408
        %v516 = vunpack.c.0.s8 %v515
        %v517 = vlaneseq
        %v518 = vshrl.u32 %v517, 7
        %v519 = vsub.s32 %v516, %v518
        %v520 = vrot.slane %v512, %v519
        %v522 = vunpack.c.l.s4 1934713408
        %v523 = vunpack.c.0.s8 %v522
        %v524 = vlaneseq
        %v525 = vshrl.u32 %v524, 7
        %v526 = vsub.s32 %v523, %v525
        %v527 = vrot.slane %v513, %v526
        %v528 = vcombine.low %v463, %v479
        %v529 = vcombine.high %v463, %v479
        %v531 = vunpack.c.l.s4 1934713408
        %v532 = vunpack.c.0.s8 %v531
        %v533 = vlaneseq
        %v534 = vshrl.u32 %v533, 7
        %v535 = vsub.s32 %v532, %v534
        %v536 = vrot.slane %v528, %v535
        %v538 = vunpack.c.l.s4 1934713408
        %v539 = vunpack.c.0.s8 %v538
        %v540 = vlaneseq
        %v541 = vshrl.u32 %v540, 7
        %v542 = vsub.s32 %v539, %v541
        %v543 = vrot.slane %v529, %v542
        %v544 = vcombine.low %v488, %v504
        %v545 = vcombine.high %v488, %v504
        %v547 = vunpack.c.l.s4 1934713408
        %v548 = vunpack.c.0.s8 %v547
        %v549 = vlaneseq
        %v550 = vshrl.u32 %v549, 7
        %v551 = vsub.s32 %v548, %v550
        %v552 = vrot.slane %v544, %v551
        %v554 = vunpack.c.l.s4 1934713408
        %v555 = vunpack.c.0.s8 %v554
        %v556 = vlaneseq
        %v557 = vshrl.u32 %v556, 7
        %v558 = vsub.s32 %v555, %v557
        %v559 = vrot.slane %v545, %v558
        %v560 = vcombine.low %v495, %v511
        %v561 = vcombine.high %v495, %v511
        %v563 = vunpack.c.l.s4 1934713408
        %v564 = vunpack.c.0.s8 %v563
        %v565 = vlaneseq
        %v566 = vshrl.u32 %v565, 7
        %v567 = vsub.s32 %v564, %v566
        %v568 = vrot.slane %v560, %v567
        %v570 = vunpack.c.l.s4 1934713408
        %v571 = vunpack.c.0.s8 %v570
        %v572 = vlaneseq
        %v573 = vshrl.u32 %v572, 7
        %v574 = vsub.s32 %v571, %v573
        %v575 = vrot.slane %v561, %v574
        %v576 = vcombine.low %v520, %v552
        %v577 = vcombine.high %v520, %v552
        %v578 = vcombine.low %v527, %v559
        %v579 = vcombine.high %v527, %v559
        %v580 = vcombine.low %v536, %v568
        %v581 = vcombine.high %v536, %v568
        %v582 = vcombine.low %v543, %v575
        %v583 = vcombine.high %v543, %v575
        %v584 = vcombine.low %v371, %v383
        %v585 = vcombine.high %v371, %v383
        %v587 = vunpack.c.l.s4 1983009808
        %v588 = vunpack.c.0.s8 %v587
        %v589 = vlaneseq
        %v590 = vshrl.u32 %v589, 7
        %v591 = vsub.s32 %v588, %v590
        %v592 = vrot.slane %v584, %v591
        %v594 = vunpack.c.l.s4 1983009808
        %v595 = vunpack.c.0.s8 %v594
        %v596 = vlaneseq
        %v597 = vshrl.u32 %v596, 7
        %v598 = vsub.s32 %v595, %v597
        %v599 = vrot.slane %v585, %v598
        %v600 = vcombine.low %v377, %v389
        %v601 = vcombine.high %v377, %v389
        %v603 = vunpack.c.l.s4 1983009808
        %v604 = vunpack.c.0.s8 %v603
        %v605 = vlaneseq
        %v606 = vshrl.u32 %v605, 7
        %v607 = vsub.s32 %v604, %v606
        %v608 = vrot.slane %v600, %v607
        %v610 = vunpack.c.l.s4 1983009808
        %v611 = vunpack.c.0.s8 %v610
        %v612 = vlaneseq
        %v613 = vshrl.u32 %v612, 7
        %v614 = vsub.s32 %v611, %v613
        %v615 = vrot.slane %v601, %v614
        %v616 = vcombine.low %v395, %v407
        %v617 = vcombine.high %v395, %v407
        %v619 = vunpack.c.l.s4 1983009808
        %v620 = vunpack.c.0.s8 %v619
        %v621 = vlaneseq
        %v622 = vshrl.u32 %v621, 7
        %v623 = vsub.s32 %v620, %v622
        %v624 = vrot.slane %v616, %v623
        %v626 = vunpack.c.l.s4 1983009808
        %v627 = vunpack.c.0.s8 %v626
        %v628 = vlaneseq
        %v629 = vshrl.u32 %v628, 7
        %v630 = vsub.s32 %v627, %v629
        %v631 = vrot.slane %v617, %v630
        %v632 = vcombine.low %v401, %v413
        %v633 = vcombine.high %v401, %v413
        %v635 = vunpack.c.l.s4 1983009808
        %v636 = vunpack.c.0.s8 %v635
        %v637 = vlaneseq
        %v638 = vshrl.u32 %v637, 7
        %v639 = vsub.s32 %v636, %v638
        %v640 = vrot.slane %v632, %v639
        %v642 = vunpack.c.l.s4 1983009808
        %v643 = vunpack.c.0.s8 %v642
        %v644 = vlaneseq
        %v645 = vshrl.u32 %v644, 7
        %v646 = vsub.s32 %v643, %v645
        %v647 = vrot.slane %v633, %v646
        %v648 = vcombine.low %v592, %v608
        %v649 = vcombine.high %v592, %v608
        %v651 = vunpack.c.l.s4 1934713408
        %v652 = vunpack.c.0.s8 %v651
        %v653 = vlaneseq
        %v654 = vshrl.u32 %v653, 7
        %v655 = vsub.s32 %v652, %v654
        %v656 = vrot.slane %v648, %v655
        %v658 = vunpack.c.l.s4 1934713408
        %v659 = vunpack.c.0.s8 %v658
        %v660 = vlaneseq
        %v661 = vshrl.u32 %v660, 7
        %v662 = vsub.s32 %v659, %v661
        %v663 = vrot.slane %v649, %v662
        %v664 = vcombine.low %v599, %v615
        %v665 = vcombine.high %v599, %v615
        %v667 = vunpack.c.l.s4 1934713408
        %v668 = vunpack.c.0.s8 %v667
        %v669 = vlaneseq
        %v670 = vshrl.u32 %v669, 7
        %v671 = vsub.s32 %v668, %v670
        %v672 = vrot.slane %v664, %v671
        %v674 = vunpack.c.l.s4 1934713408
        %v675 = vunpack.c.0.s8 %v674
        %v676 = vlaneseq
        %v677 = vshrl.u32 %v676, 7
        %v678 = vsub.s32 %v675, %v677
        %v679 = vrot.slane %v665, %v678
        %v680 = vcombine.low %v624, %v640
        %v681 = vcombine.high %v624, %v640
        %v683 = vunpack.c.l.s4 1934713408
        %v684 = vunpack.c.0.s8 %v683
        %v685 = vlaneseq
        %v686 = vshrl.u32 %v685, 7
        %v687 = vsub.s32 %v684, %v686
        %v688 = vrot.slane %v680, %v687
        %v690 = vunpack.c.l.s4 1934713408
        %v691 = vunpack.c.0.s8 %v690
        %v692 = vlaneseq
        %v693 = vshrl.u32 %v692, 7
        %v694 = vsub.s32 %v691, %v693
        %v695 = vrot.slane %v681, %v694
        %v696 = vcombine.low %v631, %v647
        %v697 = vcombine.high %v631, %v647
        %v699 = vunpack.c.l.s4 1934713408
        %v700 = vunpack.c.0.s8 %v699
        %v701 = vlaneseq
        %v702 = vshrl.u32 %v701, 7
        %v703 = vsub.s32 %v700, %v702
        %v704 = vrot.slane %v696, %v703
        %v706 = vunpack.c.l.s4 1934713408
        %v707 = vunpack.c.0.s8 %v706
        %v708 = vlaneseq
        %v709 = vshrl.u32 %v708, 7
        %v710 = vsub.s32 %v707, %v709
        %v711 = vrot.slane %v697, %v710
        %v712 = vcombine.low %v656, %v688
        %v713 = vcombine.high %v656, %v688
        %v714 = vcombine.low %v663, %v695
        %v715 = vcombine.high %v663, %v695
        %v716 = vcombine.low %v672, %v704
        %v717 = vcombine.high %v672, %v704
        %v718 = vcombine.low %v679, %v711
        %v719 = vcombine.high %v679, %v711
        %v720 = vcombine.low %v419, %v431
        %v721 = vcombine.high %v419, %v431
        %v723 = vunpack.c.l.s4 1983009808
        %v724 = vunpack.c.0.s8 %v723
        %v725 = vlaneseq
        %v726 = vshrl.u32 %v725, 7
        %v727 = vsub.s32 %v724, %v726
        %v728 = vrot.slane %v720, %v727
        %v730 = vunpack.c.l.s4 1983009808
        %v731 = vunpack.c.0.s8 %v730
        %v732 = vlaneseq
        %v733 = vshrl.u32 %v732, 7
        %v734 = vsub.s32 %v731, %v733
        %v735 = vrot.slane %v721, %v734
        %v736 = vcombine.low %v425, %v437
        %v737 = vcombine.high %v425, %v437
        %v739 = vunpack.c.l.s4 1983009808
        %v740 = vunpack.c.0.s8 %v739
        %v741 = vlaneseq
        %v742 = vshrl.u32 %v741, 7
        %v743 = vsub.s32 %v740, %v742
        %v744 = vrot.slane %v736, %v743
        %v746 = vunpack.c.l.s4 1983009808
        %v747 = vunpack.c.0.s8 %v746
        %v748 = vlaneseq
        %v749 = vshrl.u32 %v748, 7
        %v750 = vsub.s32 %v747, %v749
        %v751 = vrot.slane %v737, %v750
        %v752 = vcombine.high %v443, 0.0
        %v754 = vunpack.c.l.s4 1983009808
        %v755 = vunpack.c.0.s8 %v754
        %v756 = vlaneseq
        %v757 = vshrl.u32 %v756, 7
        %v758 = vsub.s32 %v755, %v757
        %v759 = vrot.slane %v443, %v758
        %v761 = vunpack.c.l.s4 1983009808
        %v762 = vunpack.c.0.s8 %v761
        %v763 = vlaneseq
        %v764 = vshrl.u32 %v763, 7
        %v765 = vsub.s32 %v762, %v764
        %v766 = vrot.slane %v752, %v765
        %v767 = vcombine.low %v728, %v744
        %v768 = vcombine.high %v728, %v744
        %v770 = vunpack.c.l.s4 1934713408
        %v771 = vunpack.c.0.s8 %v770
        %v772 = vlaneseq
        %v773 = vshrl.u32 %v772, 7
        %v774 = vsub.s32 %v771, %v773
        %v775 = vrot.slane %v767, %v774
        %v777 = vunpack.c.l.s4 1934713408
        %v778 = vunpack.c.0.s8 %v777
        %v779 = vlaneseq
        %v780 = vshrl.u32 %v779, 7
        %v781 = vsub.s32 %v778, %v780
        %v782 = vrot.slane %v768, %v781
        %v783 = vcombine.low %v735, %v751
        %v784 = vcombine.high %v735, %v751
        %v786 = vunpack.c.l.s4 1934713408
        %v787 = vunpack.c.0.s8 %v786
        %v788 = vlaneseq
        %v789 = vshrl.u32 %v788, 7
        %v790 = vsub.s32 %v787, %v789
        %v791 = vrot.slane %v783, %v790
        %v793 = vunpack.c.l.s4 1934713408
        %v794 = vunpack.c.0.s8 %v793
        %v795 = vlaneseq
        %v796 = vshrl.u32 %v795, 7
        %v797 = vsub.s32 %v794, %v796
        %v798 = vrot.slane %v784, %v797
        %v799 = vcombine.high %v759, 0.0
        %v801 = vunpack.c.l.s4 1934713408
        %v802 = vunpack.c.0.s8 %v801
        %v803 = vlaneseq
        %v804 = vshrl.u32 %v803, 7
        %v805 = vsub.s32 %v802, %v804
        %v806 = vrot.slane %v759, %v805
        %v808 = vunpack.c.l.s4 1934713408
        %v809 = vunpack.c.0.s8 %v808
        %v810 = vlaneseq
        %v811 = vshrl.u32 %v810, 7
        %v812 = vsub.s32 %v809, %v811
        %v813 = vrot.slane %v799, %v812
        %v814 = vcombine.high %v766, 0.0
        %v816 = vunpack.c.l.s4 1934713408
        %v817 = vunpack.c.0.s8 %v816
        %v818 = vlaneseq
        %v819 = vshrl.u32 %v818, 7
        %v820 = vsub.s32 %v817, %v819
        %v821 = vrot.slane %v766, %v820
        %v823 = vunpack.c.l.s4 1934713408
        %v824 = vunpack.c.0.s8 %v823
        %v825 = vlaneseq
        %v826 = vshrl.u32 %v825, 7
        %v827 = vsub.s32 %v824, %v826
        %v828 = vrot.slane %v814, %v827
        %v829 = vcombine.low %v775, %v806
        %v830 = vcombine.high %v775, %v806
        %v831 = vcombine.low %v782, %v813
        %v832 = vcombine.high %v782, %v813
        %v833 = vcombine.low %v791, %v821
        %v834 = vcombine.high %v791, %v821
        %v835 = vcombine.low %v798, %v828
        %v836 = vcombine.high %v798, %v828
        %v837 = vcombine.low %v323, %v337
        %v838 = vcombine.high %v323, %v337
        %v840 = vunpack.c.l.s4 1983009808
        %v841 = vunpack.c.0.s8 %v840
        %v842 = vlaneseq
        %v843 = vshrl.u32 %v842, 7
        %v844 = vsub.s32 %v841, %v843
        %v845 = vrot.slane %v837, %v844
        %v847 = vunpack.c.l.s4 1983009808
        %v848 = vunpack.c.0.s8 %v847
        %v849 = vlaneseq
        %v850 = vshrl.u32 %v849, 7
        %v851 = vsub.s32 %v848, %v850
        %v852 = vrot.slane %v838, %v851
        %v853 = vcombine.low %v331, %v343
        %v854 = vcombine.high %v331, %v343
        %v856 = vunpack.c.l.s4 1983009808
        %v857 = vunpack.c.0.s8 %v856
        %v858 = vlaneseq
        %v859 = vshrl.u32 %v858, 7
        %v860 = vsub.s32 %v857, %v859
        %v861 = vrot.slane %v853, %v860
        %v863 = vunpack.c.l.s4 1983009808
        %v864 = vunpack.c.0.s8 %v863
        %v865 = vlaneseq
        %v866 = vshrl.u32 %v865, 7
        %v867 = vsub.s32 %v864, %v866
        %v868 = vrot.slane %v854, %v867
        %v869 = vcombine.low %v349, %v361
        %v870 = vcombine.high %v349, %v361
        %v872 = vunpack.c.l.s4 1983009808
        %v873 = vunpack.c.0.s8 %v872
        %v874 = vlaneseq
        %v875 = vshrl.u32 %v874, 7
        %v876 = vsub.s32 %v873, %v875
        %v877 = vrot.slane %v869, %v876
        %v879 = vunpack.c.l.s4 1983009808
        %v880 = vunpack.c.0.s8 %v879
        %v881 = vlaneseq
        %v882 = vshrl.u32 %v881, 7
        %v883 = vsub.s32 %v880, %v882
        %v884 = vrot.slane %v870, %v883
        %v885 = vcombine.low %v355, %v367
        %v886 = vcombine.high %v355, %v367
        %v888 = vunpack.c.l.s4 1983009808
        %v889 = vunpack.c.0.s8 %v888
        %v890 = vlaneseq
        %v891 = vshrl.u32 %v890, 7
        %v892 = vsub.s32 %v889, %v891
        %v893 = vrot.slane %v885, %v892
        %v895 = vunpack.c.l.s4 1983009808
        %v896 = vunpack.c.0.s8 %v895
        %v897 = vlaneseq
        %v898 = vshrl.u32 %v897, 7
        %v899 = vsub.s32 %v896, %v898
        %v900 = vrot.slane %v886, %v899
        %v901 = vcombine.low %v845, %v861
        %v902 = vcombine.high %v845, %v861
        %v904 = vunpack.c.l.s4 1934713408
        %v905 = vunpack.c.0.s8 %v904
        %v906 = vlaneseq
        %v907 = vshrl.u32 %v906, 7
        %v908 = vsub.s32 %v905, %v907
        %v909 = vrot.slane %v901, %v908
        %v911 = vunpack.c.l.s4 1934713408
        %v912 = vunpack.c.0.s8 %v911
        %v913 = vlaneseq
        %v914 = vshrl.u32 %v913, 7
        %v915 = vsub.s32 %v912, %v914
        %v916 = vrot.slane %v902, %v915
        %v917 = vcombine.low %v852, %v868
        %v918 = vcombine.high %v852, %v868
        %v920 = vunpack.c.l.s4 1934713408
        %v921 = vunpack.c.0.s8 %v920
        %v922 = vlaneseq
        %v923 = vshrl.u32 %v922, 7
        %v924 = vsub.s32 %v921, %v923
        %v925 = vrot.slane %v917, %v924
        %v927 = vunpack.c.l.s4 1934713408
        %v928 = vunpack.c.0.s8 %v927
        %v929 = vlaneseq
        %v930 = vshrl.u32 %v929, 7
        %v931 = vsub.s32 %v928, %v930
        %v932 = vrot.slane %v918, %v931
        %v933 = vcombine.low %v877, %v893
        %v934 = vcombine.high %v877, %v893
        %v936 = vunpack.c.l.s4 1934713408
        %v937 = vunpack.c.0.s8 %v936
        %v938 = vlaneseq
        %v939 = vshrl.u32 %v938, 7
        %v940 = vsub.s32 %v937, %v939
        %v941 = vrot.slane %v933, %v940
        %v943 = vunpack.c.l.s4 1934713408
        %v944 = vunpack.c.0.s8 %v943
        %v945 = vlaneseq
        %v946 = vshrl.u32 %v945, 7
        %v947 = vsub.s32 %v944, %v946
        %v948 = vrot.slane %v934, %v947
        %v949 = vcombine.low %v884, %v900
        %v950 = vcombine.high %v884, %v900
        %v952 = vunpack.c.l.s4 1934713408
        %v953 = vunpack.c.0.s8 %v952
        %v954 = vlaneseq
        %v955 = vshrl.u32 %v954, 7
        %v956 = vsub.s32 %v953, %v955
        %v957 = vrot.slane %v949, %v956
        %v959 = vunpack.c.l.s4 1934713408
        %v960 = vunpack.c.0.s8 %v959
        %v961 = vlaneseq
        %v962 = vshrl.u32 %v961, 7
        %v963 = vsub.s32 %v960, %v962
        %v964 = vrot.slane %v950, %v963
        %v965 = vcombine.low %v909, %v941
        %v966 = vcombine.high %v909, %v941
        %v967 = vcombine.low %v916, %v948
        %v968 = vcombine.high %v916, %v948
        %v969 = vcombine.low %v925, %v957
        %v970 = vcombine.high %v925, %v957
        %v971 = vcombine.low %v932, %v964
        %v972 = vcombine.high %v932, %v964
        %v973 = vcombine.low %v373, %v385
        %v974 = vcombine.high %v373, %v385
        %v976 = vunpack.c.l.s4 1983009808
        %v977 = vunpack.c.0.s8 %v976
        %v978 = vlaneseq
        %v979 = vshrl.u32 %v978, 7
        %v980 = vsub.s32 %v977, %v979
        %v981 = vrot.slane %v973, %v980
        %v983 = vunpack.c.l.s4 1983009808
        %v984 = vunpack.c.0.s8 %v983
        %v985 = vlaneseq
        %v986 = vshrl.u32 %v985, 7
        %v987 = vsub.s32 %v984, %v986
        %v988 = vrot.slane %v974, %v987
        %v989 = vcombine.low %v379, %v391
        %v990 = vcombine.high %v379, %v391
        %v992 = vunpack.c.l.s4 1983009808
        %v993 = vunpack.c.0.s8 %v992
        %v994 = vlaneseq
        %v995 = vshrl.u32 %v994, 7
        %v996 = vsub.s32 %v993, %v995
        %v997 = vrot.slane %v989, %v996
        %v999 = vunpack.c.l.s4 1983009808
        %v1000 = vunpack.c.0.s8 %v999
        %v1001 = vlaneseq
        %v1002 = vshrl.u32 %v1001, 7
        %v1003 = vsub.s32 %v1000, %v1002
        %v1004 = vrot.slane %v990, %v1003
        %v1005 = vcombine.low %v397, %v409
        %v1006 = vcombine.high %v397, %v409
        %v1008 = vunpack.c.l.s4 1983009808
        %v1009 = vunpack.c.0.s8 %v1008
        %v1010 = vlaneseq
        %v1011 = vshrl.u32 %v1010, 7
        %v1012 = vsub.s32 %v1009, %v1011
        %v1013 = vrot.slane %v1005, %v1012
        %v1015 = vunpack.c.l.s4 1983009808
        %v1016 = vunpack.c.0.s8 %v1015
        %v1017 = vlaneseq
        %v1018 = vshrl.u32 %v1017, 7
        %v1019 = vsub.s32 %v1016, %v1018
        %v1020 = vrot.slane %v1006, %v1019
        %v1021 = vcombine.low %v403, %v415
        %v1022 = vcombine.high %v403, %v415
        %v1024 = vunpack.c.l.s4 1983009808
        %v1025 = vunpack.c.0.s8 %v1024
        %v1026 = vlaneseq
        %v1027 = vshrl.u32 %v1026, 7
        %v1028 = vsub.s32 %v1025, %v1027
        %v1029 = vrot.slane %v1021, %v1028
        %v1031 = vunpack.c.l.s4 1983009808
        %v1032 = vunpack.c.0.s8 %v1031
        %v1033 = vlaneseq
        %v1034 = vshrl.u32 %v1033, 7
        %v1035 = vsub.s32 %v1032, %v1034
        %v1036 = vrot.slane %v1022, %v1035
        %v1037 = vcombine.low %v981, %v997
        %v1038 = vcombine.high %v981, %v997
        %v1040 = vunpack.c.l.s4 1934713408
        %v1041 = vunpack.c.0.s8 %v1040
        %v1042 = vlaneseq
        %v1043 = vshrl.u32 %v1042, 7
        %v1044 = vsub.s32 %v1041, %v1043
        %v1045 = vrot.slane %v1037, %v1044
        %v1047 = vunpack.c.l.s4 1934713408
        %v1048 = vunpack.c.0.s8 %v1047
        %v1049 = vlaneseq
        %v1050 = vshrl.u32 %v1049, 7
        %v1051 = vsub.s32 %v1048, %v1050
        %v1052 = vrot.slane %v1038, %v1051
        %v1053 = vcombine.low %v988, %v1004
        %v1054 = vcombine.high %v988, %v1004
        %v1056 = vunpack.c.l.s4 1934713408
        %v1057 = vunpack.c.0.s8 %v1056
        %v1058 = vlaneseq
        %v1059 = vshrl.u32 %v1058, 7
        %v1060 = vsub.s32 %v1057, %v1059
        %v1061 = vrot.slane %v1053, %v1060
        %v1063 = vunpack.c.l.s4 1934713408
        %v1064 = vunpack.c.0.s8 %v1063
        %v1065 = vlaneseq
        %v1066 = vshrl.u32 %v1065, 7
        %v1067 = vsub.s32 %v1064, %v1066
        %v1068 = vrot.slane %v1054, %v1067
        %v1069 = vcombine.low %v1013, %v1029
        %v1070 = vcombine.high %v1013, %v1029
        %v1072 = vunpack.c.l.s4 1934713408
        %v1073 = vunpack.c.0.s8 %v1072
        %v1074 = vlaneseq
        %v1075 = vshrl.u32 %v1074, 7
        %v1076 = vsub.s32 %v1073, %v1075
        %v1077 = vrot.slane %v1069, %v1076
        %v1079 = vunpack.c.l.s4 1934713408
        %v1080 = vunpack.c.0.s8 %v1079
        %v1081 = vlaneseq
        %v1082 = vshrl.u32 %v1081, 7
        %v1083 = vsub.s32 %v1080, %v1082
        %v1084 = vrot.slane %v1070, %v1083
        %v1085 = vcombine.low %v1020, %v1036
        %v1086 = vcombine.high %v1020, %v1036
        %v1088 = vunpack.c.l.s4 1934713408
        %v1089 = vunpack.c.0.s8 %v1088
        %v1090 = vlaneseq
        %v1091 = vshrl.u32 %v1090, 7
        %v1092 = vsub.s32 %v1089, %v1091
        %v1093 = vrot.slane %v1085, %v1092
        %v1095 = vunpack.c.l.s4 1934713408
        %v1096 = vunpack.c.0.s8 %v1095
        %v1097 = vlaneseq
        %v1098 = vshrl.u32 %v1097, 7
        %v1099 = vsub.s32 %v1096, %v1098
        %v1100 = vrot.slane %v1086, %v1099
        %v1101 = vcombine.low %v1045, %v1077
        %v1102 = vcombine.high %v1045, %v1077
        %v1103 = vcombine.low %v1052, %v1084
        %v1104 = vcombine.high %v1052, %v1084
        %v1105 = vcombine.low %v1061, %v1093
        %v1106 = vcombine.high %v1061, %v1093
        %v1107 = vcombine.low %v1068, %v1100
        %v1108 = vcombine.high %v1068, %v1100
        %v1109 = vcombine.low %v421, %v433
        %v1110 = vcombine.high %v421, %v433
        %v1112 = vunpack.c.l.s4 1983009808
        %v1113 = vunpack.c.0.s8 %v1112
        %v1114 = vlaneseq
        %v1115 = vshrl.u32 %v1114, 7
        %v1116 = vsub.s32 %v1113, %v1115
        %v1117 = vrot.slane %v1109, %v1116
        %v1119 = vunpack.c.l.s4 1983009808
        %v1120 = vunpack.c.0.s8 %v1119
        %v1121 = vlaneseq
        %v1122 = vshrl.u32 %v1121, 7
        %v1123 = vsub.s32 %v1120, %v1122
        %v1124 = vrot.slane %v1110, %v1123
        %v1125 = vcombine.low %v427, %v439
        %v1126 = vcombine.high %v427, %v439
        %v1128 = vunpack.c.l.s4 1983009808
        %v1129 = vunpack.c.0.s8 %v1128
        %v1130 = vlaneseq
        %v1131 = vshrl.u32 %v1130, 7
        %v1132 = vsub.s32 %v1129, %v1131
        %v1133 = vrot.slane %v1125, %v1132
        %v1135 = vunpack.c.l.s4 1983009808
        %v1136 = vunpack.c.0.s8 %v1135
        %v1137 = vlaneseq
        %v1138 = vshrl.u32 %v1137, 7
        %v1139 = vsub.s32 %v1136, %v1138
        %v1140 = vrot.slane %v1126, %v1139
        %v1141 = vcombine.high %v445, 0.0
        %v1143 = vunpack.c.l.s4 1983009808
        %v1144 = vunpack.c.0.s8 %v1143
        %v1145 = vlaneseq
        %v1146 = vshrl.u32 %v1145, 7
        %v1147 = vsub.s32 %v1144, %v1146
        %v1148 = vrot.slane %v445, %v1147
        %v1150 = vunpack.c.l.s4 1983009808
        %v1151 = vunpack.c.0.s8 %v1150
        %v1152 = vlaneseq
        %v1153 = vshrl.u32 %v1152, 7
        %v1154 = vsub.s32 %v1151, %v1153
        %v1155 = vrot.slane %v1141, %v1154
        %v1156 = vcombine.low %v1117, %v1133
        %v1157 = vcombine.high %v1117, %v1133
        %v1159 = vunpack.c.l.s4 1934713408
        %v1160 = vunpack.c.0.s8 %v1159
        %v1161 = vlaneseq
        %v1162 = vshrl.u32 %v1161, 7
        %v1163 = vsub.s32 %v1160, %v1162
        %v1164 = vrot.slane %v1156, %v1163
        %v1166 = vunpack.c.l.s4 1934713408
        %v1167 = vunpack.c.0.s8 %v1166
        %v1168 = vlaneseq
        %v1169 = vshrl.u32 %v1168, 7
        %v1170 = vsub.s32 %v1167, %v1169
        %v1171 = vrot.slane %v1157, %v1170
        %v1172 = vcombine.low %v1124, %v1140
        %v1173 = vcombine.high %v1124, %v1140
        %v1175 = vunpack.c.l.s4 1934713408
        %v1176 = vunpack.c.0.s8 %v1175
        %v1177 = vlaneseq
        %v1178 = vshrl.u32 %v1177, 7
        %v1179 = vsub.s32 %v1176, %v1178
        %v1180 = vrot.slane %v1172, %v1179
        %v1182 = vunpack.c.l.s4 1934713408
        %v1183 = vunpack.c.0.s8 %v1182
        %v1184 = vlaneseq
        %v1185 = vshrl.u32 %v1184, 7
        %v1186 = vsub.s32 %v1183, %v1185
        %v1187 = vrot.slane %v1173, %v1186
        %v1188 = vcombine.high %v1148, 0.0
        %v1190 = vunpack.c.l.s4 1934713408
        %v1191 = vunpack.c.0.s8 %v1190
        %v1192 = vlaneseq
        %v1193 = vshrl.u32 %v1192, 7
        %v1194 = vsub.s32 %v1191, %v1193
        %v1195 = vrot.slane %v1148, %v1194
        %v1197 = vunpack.c.l.s4 1934713408
        %v1198 = vunpack.c.0.s8 %v1197
        %v1199 = vlaneseq
        %v1200 = vshrl.u32 %v1199, 7
        %v1201 = vsub.s32 %v1198, %v1200
        %v1202 = vrot.slane %v1188, %v1201
        %v1203 = vcombine.high %v1155, 0.0
        %v1205 = vunpack.c.l.s4 1934713408
        %v1206 = vunpack.c.0.s8 %v1205
        %v1207 = vlaneseq
        %v1208 = vshrl.u32 %v1207, 7
        %v1209 = vsub.s32 %v1206, %v1208
        %v1210 = vrot.slane %v1155, %v1209
        %v1212 = vunpack.c.l.s4 1934713408
        %v1213 = vunpack.c.0.s8 %v1212
        %v1214 = vlaneseq
        %v1215 = vshrl.u32 %v1214, 7
        %v1216 = vsub.s32 %v1213, %v1215
        %v1217 = vrot.slane %v1203, %v1216
        %v1218 = vcombine.low %v1164, %v1195
        %v1219 = vcombine.high %v1164, %v1195
        %v1220 = vcombine.low %v1171, %v1202
        %v1221 = vcombine.high %v1171, %v1202
        %v1222 = vcombine.low %v1180, %v1210
        %v1223 = vcombine.high %v1180, %v1210
        %v1224 = vcombine.low %v1187, %v1217
        %v1225 = vcombine.high %v1187, %v1217
        %v1226 = vcombine.low %v576, %v578
        %v1227 = vcombine.high %v576, %v578
        %v1229 = vunpack.c.l.s4 1983009808
        %v1230 = vunpack.c.0.s8 %v1229
        %v1231 = vlaneseq
        %v1232 = vshrl.u32 %v1231, 7
        %v1233 = vsub.s32 %v1230, %v1232
        %v1234 = vrot.slane %v1226, %v1233
        %v1236 = vunpack.c.l.s4 1983009808
        %v1237 = vunpack.c.0.s8 %v1236
        %v1238 = vlaneseq
        %v1239 = vshrl.u32 %v1238, 7
        %v1240 = vsub.s32 %v1237, %v1239
        %v1241 = vrot.slane %v1227, %v1240
        %v1242 = vcombine.low %v577, %v579
        %v1243 = vcombine.high %v577, %v579
        %v1245 = vunpack.c.l.s4 1983009808
        %v1246 = vunpack.c.0.s8 %v1245
        %v1247 = vlaneseq
        %v1248 = vshrl.u32 %v1247, 7
        %v1249 = vsub.s32 %v1246, %v1248
        %v1250 = vrot.slane %v1242, %v1249
        %v1252 = vunpack.c.l.s4 1983009808
        %v1253 = vunpack.c.0.s8 %v1252
        %v1254 = vlaneseq
        %v1255 = vshrl.u32 %v1254, 7
        %v1256 = vsub.s32 %v1253, %v1255
        %v1257 = vrot.slane %v1243, %v1256
        %v1258 = vcombine.low %v580, %v582
        %v1259 = vcombine.high %v580, %v582
        %v1261 = vunpack.c.l.s4 1983009808
        %v1262 = vunpack.c.0.s8 %v1261
        %v1263 = vlaneseq
        %v1264 = vshrl.u32 %v1263, 7
        %v1265 = vsub.s32 %v1262, %v1264
        %v1266 = vrot.slane %v1258, %v1265
        %v1268 = vunpack.c.l.s4 1983009808
        %v1269 = vunpack.c.0.s8 %v1268
        %v1270 = vlaneseq
        %v1271 = vshrl.u32 %v1270, 7
        %v1272 = vsub.s32 %v1269, %v1271
        %v1273 = vrot.slane %v1259, %v1272
        %v1274 = vcombine.low %v581, %v583
        %v1275 = vcombine.high %v581, %v583
        %v1277 = vunpack.c.l.s4 1983009808
        %v1278 = vunpack.c.0.s8 %v1277
        %v1279 = vlaneseq
        %v1280 = vshrl.u32 %v1279, 7
        %v1281 = vsub.s32 %v1278, %v1280
        %v1282 = vrot.slane %v1274, %v1281
        %v1284 = vunpack.c.l.s4 1983009808
        %v1285 = vunpack.c.0.s8 %v1284
        %v1286 = vlaneseq
        %v1287 = vshrl.u32 %v1286, 7
        %v1288 = vsub.s32 %v1285, %v1287
        %v1289 = vrot.slane %v1275, %v1288
        %v1290 = vcombine.low %v1234, %v1250
        %v1291 = vcombine.high %v1234, %v1250
        %v1293 = vunpack.c.l.s4 1934713408
        %v1294 = vunpack.c.0.s8 %v1293
        %v1295 = vlaneseq
        %v1296 = vshrl.u32 %v1295, 7
        %v1297 = vsub.s32 %v1294, %v1296
        %v1298 = vrot.slane %v1290, %v1297
        %v1300 = vunpack.c.l.s4 1934713408
        %v1301 = vunpack.c.0.s8 %v1300
        %v1302 = vlaneseq
        %v1303 = vshrl.u32 %v1302, 7
        %v1304 = vsub.s32 %v1301, %v1303
        %v1305 = vrot.slane %v1291, %v1304
        %v1306 = vcombine.low %v1241, %v1257
        %v1307 = vcombine.high %v1241, %v1257
        %v1309 = vunpack.c.l.s4 1934713408
        %v1310 = vunpack.c.0.s8 %v1309
        %v1311 = vlaneseq
        %v1312 = vshrl.u32 %v1311, 7
        %v1313 = vsub.s32 %v1310, %v1312
        %v1314 = vrot.slane %v1306, %v1313
        %v1316 = vunpack.c.l.s4 1934713408
        %v1317 = vunpack.c.0.s8 %v1316
        %v1318 = vlaneseq
        %v1319 = vshrl.u32 %v1318, 7
        %v1320 = vsub.s32 %v1317, %v1319
        %v1321 = vrot.slane %v1307, %v1320
        %v1322 = vcombine.low %v1266, %v1282
        %v1323 = vcombine.high %v1266, %v1282
        %v1325 = vunpack.c.l.s4 1934713408
        %v1326 = vunpack.c.0.s8 %v1325
        %v1327 = vlaneseq
        %v1328 = vshrl.u32 %v1327, 7
        %v1329 = vsub.s32 %v1326, %v1328
        %v1330 = vrot.slane %v1322, %v1329
        %v1332 = vunpack.c.l.s4 1934713408
        %v1333 = vunpack.c.0.s8 %v1332
        %v1334 = vlaneseq
        %v1335 = vshrl.u32 %v1334, 7
        %v1336 = vsub.s32 %v1333, %v1335
        %v1337 = vrot.slane %v1323, %v1336
        %v1338 = vcombine.low %v1273, %v1289
        %v1339 = vcombine.high %v1273, %v1289
        %v1341 = vunpack.c.l.s4 1934713408
        %v1342 = vunpack.c.0.s8 %v1341
        %v1343 = vlaneseq
        %v1344 = vshrl.u32 %v1343, 7
        %v1345 = vsub.s32 %v1342, %v1344
        %v1346 = vrot.slane %v1338, %v1345
        %v1348 = vunpack.c.l.s4 1934713408
        %v1349 = vunpack.c.0.s8 %v1348
        %v1350 = vlaneseq
        %v1351 = vshrl.u32 %v1350, 7
        %v1352 = vsub.s32 %v1349, %v1351
        %v1353 = vrot.slane %v1339, %v1352
        %v1354 = vcombine.low %v1298, %v1330
        %v1355 = vcombine.high %v1298, %v1330
        %v1356 = vcombine.low %v1305, %v1337
        %v1357 = vcombine.high %v1305, %v1337
        %v1358 = vcombine.low %v1314, %v1346
        %v1359 = vcombine.high %v1314, %v1346
        %v1360 = vcombine.low %v1321, %v1353
        %v1361 = vcombine.high %v1321, %v1353
        %v1362 = vcombine.low %v965, %v967
        %v1363 = vcombine.high %v965, %v967
        %v1365 = vunpack.c.l.s4 1983009808
        %v1366 = vunpack.c.0.s8 %v1365
        %v1367 = vlaneseq
        %v1368 = vshrl.u32 %v1367, 7
        %v1369 = vsub.s32 %v1366, %v1368
        %v1370 = vrot.slane %v1362, %v1369
        %v1372 = vunpack.c.l.s4 1983009808
        %v1373 = vunpack.c.0.s8 %v1372
        %v1374 = vlaneseq
        %v1375 = vshrl.u32 %v1374, 7
        %v1376 = vsub.s32 %v1373, %v1375
        %v1377 = vrot.slane %v1363, %v1376
        %v1378 = vcombine.low %v966, %v968
        %v1379 = vcombine.high %v966, %v968
        %v1381 = vunpack.c.l.s4 1983009808
        %v1382 = vunpack.c.0.s8 %v1381
        %v1383 = vlaneseq
        %v1384 = vshrl.u32 %v1383, 7
        %v1385 = vsub.s32 %v1382, %v1384
        %v1386 = vrot.slane %v1378, %v1385
        %v1388 = vunpack.c.l.s4 1983009808
        %v1389 = vunpack.c.0.s8 %v1388
        %v1390 = vlaneseq
        %v1391 = vshrl.u32 %v1390, 7
        %v1392 = vsub.s32 %v1389, %v1391
        %v1393 = vrot.slane %v1379, %v1392
        %v1394 = vcombine.low %v969, %v971
        %v1395 = vcombine.high %v969, %v971
        %v1397 = vunpack.c.l.s4 1983009808
        %v1398 = vunpack.c.0.s8 %v1397
        %v1399 = vlaneseq
        %v1400 = vshrl.u32 %v1399, 7
        %v1401 = vsub.s32 %v1398, %v1400
        %v1402 = vrot.slane %v1394, %v1401
        %v1404 = vunpack.c.l.s4 1983009808
        %v1405 = vunpack.c.0.s8 %v1404
        %v1406 = vlaneseq
        %v1407 = vshrl.u32 %v1406, 7
        %v1408 = vsub.s32 %v1405, %v1407
        %v1409 = vrot.slane %v1395, %v1408
        %v1410 = vcombine.low %v970, %v972
        %v1411 = vcombine.high %v970, %v972
        %v1413 = vunpack.c.l.s4 1983009808
        %v1414 = vunpack.c.0.s8 %v1413
        %v1415 = vlaneseq
        %v1416 = vshrl.u32 %v1415, 7
        %v1417 = vsub.s32 %v1414, %v1416
        %v1418 = vrot.slane %v1410, %v1417
        %v1420 = vunpack.c.l.s4 1983009808
        %v1421 = vunpack.c.0.s8 %v1420
        %v1422 = vlaneseq
        %v1423 = vshrl.u32 %v1422, 7
        %v1424 = vsub.s32 %v1421, %v1423
        %v1425 = vrot.slane %v1411, %v1424
        %v1426 = vcombine.low %v1370, %v1386
        %v1427 = vcombine.high %v1370, %v1386
        %v1429 = vunpack.c.l.s4 1934713408
        %v1430 = vunpack.c.0.s8 %v1429
        %v1431 = vlaneseq
        %v1432 = vshrl.u32 %v1431, 7
        %v1433 = vsub.s32 %v1430, %v1432
        %v1434 = vrot.slane %v1426, %v1433
        %v1436 = vunpack.c.l.s4 1934713408
        %v1437 = vunpack.c.0.s8 %v1436
        %v1438 = vlaneseq
        %v1439 = vshrl.u32 %v1438, 7
        %v1440 = vsub.s32 %v1437, %v1439
        %v1441 = vrot.slane %v1427, %v1440
        %v1442 = vcombine.low %v1377, %v1393
        %v1443 = vcombine.high %v1377, %v1393
        %v1445 = vunpack.c.l.s4 1934713408
        %v1446 = vunpack.c.0.s8 %v1445
        %v1447 = vlaneseq
        %v1448 = vshrl.u32 %v1447, 7
        %v1449 = vsub.s32 %v1446, %v1448
        %v1450 = vrot.slane %v1442, %v1449
        %v1452 = vunpack.c.l.s4 1934713408
        %v1453 = vunpack.c.0.s8 %v1452
        %v1454 = vlaneseq
        %v1455 = vshrl.u32 %v1454, 7
        %v1456 = vsub.s32 %v1453, %v1455
        %v1457 = vrot.slane %v1443, %v1456
        %v1458 = vcombine.low %v1402, %v1418
        %v1459 = vcombine.high %v1402, %v1418
        %v1461 = vunpack.c.l.s4 1934713408
        %v1462 = vunpack.c.0.s8 %v1461
        %v1463 = vlaneseq
        %v1464 = vshrl.u32 %v1463, 7
        %v1465 = vsub.s32 %v1462, %v1464
        %v1466 = vrot.slane %v1458, %v1465
        %v1468 = vunpack.c.l.s4 1934713408
        %v1469 = vunpack.c.0.s8 %v1468
        %v1470 = vlaneseq
        %v1471 = vshrl.u32 %v1470, 7
        %v1472 = vsub.s32 %v1469, %v1471
        %v1473 = vrot.slane %v1459, %v1472
        %v1474 = vcombine.low %v1409, %v1425
        %v1475 = vcombine.high %v1409, %v1425
        %v1477 = vunpack.c.l.s4 1934713408
        %v1478 = vunpack.c.0.s8 %v1477
        %v1479 = vlaneseq
        %v1480 = vshrl.u32 %v1479, 7
        %v1481 = vsub.s32 %v1478, %v1480
        %v1482 = vrot.slane %v1474, %v1481
        %v1484 = vunpack.c.l.s4 1934713408
        %v1485 = vunpack.c.0.s8 %v1484
        %v1486 = vlaneseq
        %v1487 = vshrl.u32 %v1486, 7
        %v1488 = vsub.s32 %v1485, %v1487
        %v1489 = vrot.slane %v1475, %v1488
        %v1490 = vcombine.low %v1434, %v1466
        %v1491 = vcombine.high %v1434, %v1466
        %v1492 = vcombine.low %v1441, %v1473
        %v1493 = vcombine.high %v1441, %v1473
        %v1494 = vcombine.low %v1450, %v1482
        %v1495 = vcombine.high %v1450, %v1482
        %v1496 = vcombine.low %v1457, %v1489
        %v1497 = vcombine.high %v1457, %v1489
        %v1498 = vcombine.low %v712, %v714
        %v1499 = vcombine.high %v712, %v714
        %v1501 = vunpack.c.l.s4 1983009808
        %v1502 = vunpack.c.0.s8 %v1501
        %v1503 = vlaneseq
        %v1504 = vshrl.u32 %v1503, 7
        %v1505 = vsub.s32 %v1502, %v1504
        %v1506 = vrot.slane %v1498, %v1505
        %v1508 = vunpack.c.l.s4 1983009808
        %v1509 = vunpack.c.0.s8 %v1508
        %v1510 = vlaneseq
        %v1511 = vshrl.u32 %v1510, 7
        %v1512 = vsub.s32 %v1509, %v1511
        %v1513 = vrot.slane %v1499, %v1512
        %v1514 = vcombine.low %v713, %v715
        %v1515 = vcombine.high %v713, %v715
        %v1517 = vunpack.c.l.s4 1983009808
        %v1518 = vunpack.c.0.s8 %v1517
        %v1519 = vlaneseq
        %v1520 = vshrl.u32 %v1519, 7
        %v1521 = vsub.s32 %v1518, %v1520
        %v1522 = vrot.slane %v1514, %v1521
        %v1524 = vunpack.c.l.s4 1983009808
        %v1525 = vunpack.c.0.s8 %v1524
        %v1526 = vlaneseq
        %v1527 = vshrl.u32 %v1526, 7
        %v1528 = vsub.s32 %v1525, %v1527
        %v1529 = vrot.slane %v1515, %v1528
        %v1530 = vcombine.low %v716, %v718
        %v1531 = vcombine.high %v716, %v718
        %v1533 = vunpack.c.l.s4 1983009808
        %v1534 = vunpack.c.0.s8 %v1533
        %v1535 = vlaneseq
        %v1536 = vshrl.u32 %v1535, 7
        %v1537 = vsub.s32 %v1534, %v1536
        %v1538 = vrot.slane %v1530, %v1537
        %v1540 = vunpack.c.l.s4 1983009808
        %v1541 = vunpack.c.0.s8 %v1540
        %v1542 = vlaneseq
        %v1543 = vshrl.u32 %v1542, 7
        %v1544 = vsub.s32 %v1541, %v1543
        %v1545 = vrot.slane %v1531, %v1544
        %v1546 = vcombine.low %v717, %v719
        %v1547 = vcombine.high %v717, %v719
        %v1549 = vunpack.c.l.s4 1983009808
        %v1550 = vunpack.c.0.s8 %v1549
        %v1551 = vlaneseq
        %v1552 = vshrl.u32 %v1551, 7
        %v1553 = vsub.s32 %v1550, %v1552
        %v1554 = vrot.slane %v1546, %v1553
        %v1556 = vunpack.c.l.s4 1983009808
        %v1557 = vunpack.c.0.s8 %v1556
        %v1558 = vlaneseq
        %v1559 = vshrl.u32 %v1558, 7
        %v1560 = vsub.s32 %v1557, %v1559
        %v1561 = vrot.slane %v1547, %v1560
        %v1562 = vcombine.low %v1506, %v1522
        %v1563 = vcombine.high %v1506, %v1522
        %v1565 = vunpack.c.l.s4 1934713408
        %v1566 = vunpack.c.0.s8 %v1565
        %v1567 = vlaneseq
        %v1568 = vshrl.u32 %v1567, 7
        %v1569 = vsub.s32 %v1566, %v1568
        %v1570 = vrot.slane %v1562, %v1569
        %v1572 = vunpack.c.l.s4 1934713408
        %v1573 = vunpack.c.0.s8 %v1572
        %v1574 = vlaneseq
        %v1575 = vshrl.u32 %v1574, 7
        %v1576 = vsub.s32 %v1573, %v1575
        %v1577 = vrot.slane %v1563, %v1576
        %v1578 = vcombine.low %v1513, %v1529
        %v1579 = vcombine.high %v1513, %v1529
        %v1581 = vunpack.c.l.s4 1934713408
        %v1582 = vunpack.c.0.s8 %v1581
        %v1583 = vlaneseq
        %v1584 = vshrl.u32 %v1583, 7
        %v1585 = vsub.s32 %v1582, %v1584
        %v1586 = vrot.slane %v1578, %v1585
        %v1588 = vunpack.c.l.s4 1934713408
        %v1589 = vunpack.c.0.s8 %v1588
        %v1590 = vlaneseq
        %v1591 = vshrl.u32 %v1590, 7
        %v1592 = vsub.s32 %v1589, %v1591
        %v1593 = vrot.slane %v1579, %v1592
        %v1594 = vcombine.low %v1538, %v1554
        %v1595 = vcombine.high %v1538, %v1554
        %v1597 = vunpack.c.l.s4 1934713408
        %v1598 = vunpack.c.0.s8 %v1597
        %v1599 = vlaneseq
        %v1600 = vshrl.u32 %v1599, 7
        %v1601 = vsub.s32 %v1598, %v1600
        %v1602 = vrot.slane %v1594, %v1601
        %v1604 = vunpack.c.l.s4 1934713408
        %v1605 = vunpack.c.0.s8 %v1604
        %v1606 = vlaneseq
        %v1607 = vshrl.u32 %v1606, 7
        %v1608 = vsub.s32 %v1605, %v1607
        %v1609 = vrot.slane %v1595, %v1608
        %v1610 = vcombine.low %v1545, %v1561
        %v1611 = vcombine.high %v1545, %v1561
        %v1613 = vunpack.c.l.s4 1934713408
        %v1614 = vunpack.c.0.s8 %v1613
        %v1615 = vlaneseq
        %v1616 = vshrl.u32 %v1615, 7
        %v1617 = vsub.s32 %v1614, %v1616
        %v1618 = vrot.slane %v1610, %v1617
        %v1620 = vunpack.c.l.s4 1934713408
        %v1621 = vunpack.c.0.s8 %v1620
        %v1622 = vlaneseq
        %v1623 = vshrl.u32 %v1622, 7
        %v1624 = vsub.s32 %v1621, %v1623
        %v1625 = vrot.slane %v1611, %v1624
        %v1626 = vcombine.low %v1570, %v1602
        %v1627 = vcombine.high %v1570, %v1602
        %v1628 = vcombine.low %v1577, %v1609
        %v1629 = vcombine.high %v1577, %v1609
        %v1630 = vcombine.low %v1586, %v1618
        %v1631 = vcombine.high %v1586, %v1618
        %v1632 = vcombine.low %v1593, %v1625
        %v1633 = vcombine.high %v1593, %v1625
        %v1634 = vcombine.low %v1101, %v1103
        %v1635 = vcombine.high %v1101, %v1103
        %v1637 = vunpack.c.l.s4 1983009808
        %v1638 = vunpack.c.0.s8 %v1637
        %v1639 = vlaneseq
        %v1640 = vshrl.u32 %v1639, 7
        %v1641 = vsub.s32 %v1638, %v1640
        %v1642 = vrot.slane %v1634, %v1641
        %v1644 = vunpack.c.l.s4 1983009808
        %v1645 = vunpack.c.0.s8 %v1644
        %v1646 = vlaneseq
        %v1647 = vshrl.u32 %v1646, 7
        %v1648 = vsub.s32 %v1645, %v1647
        %v1649 = vrot.slane %v1635, %v1648
        %v1650 = vcombine.low %v1102, %v1104
        %v1651 = vcombine.high %v1102, %v1104
        %v1653 = vunpack.c.l.s4 1983009808
        %v1654 = vunpack.c.0.s8 %v1653
        %v1655 = vlaneseq
        %v1656 = vshrl.u32 %v1655, 7
        %v1657 = vsub.s32 %v1654, %v1656
        %v1658 = vrot.slane %v1650, %v1657
        %v1660 = vunpack.c.l.s4 1983009808
        %v1661 = vunpack.c.0.s8 %v1660
        %v1662 = vlaneseq
        %v1663 = vshrl.u32 %v1662, 7
        %v1664 = vsub.s32 %v1661, %v1663
        %v1665 = vrot.slane %v1651, %v1664
        %v1666 = vcombine.low %v1105, %v1107
        %v1667 = vcombine.high %v1105, %v1107
        %v1669 = vunpack.c.l.s4 1983009808
        %v1670 = vunpack.c.0.s8 %v1669
        %v1671 = vlaneseq
        %v1672 = vshrl.u32 %v1671, 7
        %v1673 = vsub.s32 %v1670, %v1672
        %v1674 = vrot.slane %v1666, %v1673
        %v1676 = vunpack.c.l.s4 1983009808
        %v1677 = vunpack.c.0.s8 %v1676
        %v1678 = vlaneseq
        %v1679 = vshrl.u32 %v1678, 7
        %v1680 = vsub.s32 %v1677, %v1679
        %v1681 = vrot.slane %v1667, %v1680
        %v1682 = vcombine.low %v1106, %v1108
        %v1683 = vcombine.high %v1106, %v1108
        %v1685 = vunpack.c.l.s4 1983009808
        %v1686 = vunpack.c.0.s8 %v1685
        %v1687 = vlaneseq
        %v1688 = vshrl.u32 %v1687, 7
        %v1689 = vsub.s32 %v1686, %v1688
        %v1690 = vrot.slane %v1682, %v1689
        %v1692 = vunpack.c.l.s4 1983009808
        %v1693 = vunpack.c.0.s8 %v1692
        %v1694 = vlaneseq
        %v1695 = vshrl.u32 %v1694, 7
        %v1696 = vsub.s32 %v1693, %v1695
        %v1697 = vrot.slane %v1683, %v1696
        %v1698 = vcombine.low %v1642, %v1658
        %v1699 = vcombine.high %v1642, %v1658
        %v1701 = vunpack.c.l.s4 1934713408
        %v1702 = vunpack.c.0.s8 %v1701
        %v1703 = vlaneseq
        %v1704 = vshrl.u32 %v1703, 7
        %v1705 = vsub.s32 %v1702, %v1704
        %v1706 = vrot.slane %v1698, %v1705
        %v1708 = vunpack.c.l.s4 1934713408
        %v1709 = vunpack.c.0.s8 %v1708
        %v1710 = vlaneseq
        %v1711 = vshrl.u32 %v1710, 7
        %v1712 = vsub.s32 %v1709, %v1711
        %v1713 = vrot.slane %v1699, %v1712
        %v1714 = vcombine.low %v1649, %v1665
        %v1715 = vcombine.high %v1649, %v1665
        %v1717 = vunpack.c.l.s4 1934713408
        %v1718 = vunpack.c.0.s8 %v1717
        %v1719 = vlaneseq
        %v1720 = vshrl.u32 %v1719, 7
        %v1721 = vsub.s32 %v1718, %v1720
        %v1722 = vrot.slane %v1714, %v1721
        %v1724 = vunpack.c.l.s4 1934713408
        %v1725 = vunpack.c.0.s8 %v1724
        %v1726 = vlaneseq
        %v1727 = vshrl.u32 %v1726, 7
        %v1728 = vsub.s32 %v1725, %v1727
        %v1729 = vrot.slane %v1715, %v1728
        %v1730 = vcombine.low %v1674, %v1690
        %v1731 = vcombine.high %v1674, %v1690
        %v1733 = vunpack.c.l.s4 1934713408
        %v1734 = vunpack.c.0.s8 %v1733
        %v1735 = vlaneseq
        %v1736 = vshrl.u32 %v1735, 7
        %v1737 = vsub.s32 %v1734, %v1736
        %v1738 = vrot.slane %v1730, %v1737
        %v1740 = vunpack.c.l.s4 1934713408
        %v1741 = vunpack.c.0.s8 %v1740
        %v1742 = vlaneseq
        %v1743 = vshrl.u32 %v1742, 7
        %v1744 = vsub.s32 %v1741, %v1743
        %v1745 = vrot.slane %v1731, %v1744
        %v1746 = vcombine.low %v1681, %v1697
        %v1747 = vcombine.high %v1681, %v1697
        %v1749 = vunpack.c.l.s4 1934713408
        %v1750 = vunpack.c.0.s8 %v1749
        %v1751 = vlaneseq
        %v1752 = vshrl.u32 %v1751, 7
        %v1753 = vsub.s32 %v1750, %v1752
        %v1754 = vrot.slane %v1746, %v1753
        %v1756 = vunpack.c.l.s4 1934713408
        %v1757 = vunpack.c.0.s8 %v1756
        %v1758 = vlaneseq
        %v1759 = vshrl.u32 %v1758, 7
        %v1760 = vsub.s32 %v1757, %v1759
        %v1761 = vrot.slane %v1747, %v1760
        %v1762 = vcombine.low %v1706, %v1738
        %v1763 = vcombine.high %v1706, %v1738
        %v1764 = vcombine.low %v1713, %v1745
        %v1765 = vcombine.high %v1713, %v1745
        %v1766 = vcombine.low %v1722, %v1754
        %v1767 = vcombine.high %v1722, %v1754
        %v1768 = vcombine.low %v1729, %v1761
        %v1769 = vcombine.high %v1729, %v1761
        %v1770 = vcombine.low %v829, %v831
        %v1771 = vcombine.high %v829, %v831
        %v1773 = vunpack.c.l.s4 1983009808
        %v1774 = vunpack.c.0.s8 %v1773
        %v1775 = vlaneseq
        %v1776 = vshrl.u32 %v1775, 7
        %v1777 = vsub.s32 %v1774, %v1776
        %v1778 = vrot.slane %v1770, %v1777
        %v1780 = vunpack.c.l.s4 1983009808
        %v1781 = vunpack.c.0.s8 %v1780
        %v1782 = vlaneseq
        %v1783 = vshrl.u32 %v1782, 7
        %v1784 = vsub.s32 %v1781, %v1783
        %v1785 = vrot.slane %v1771, %v1784
        %v1786 = vcombine.low %v830, %v832
        %v1787 = vcombine.high %v830, %v832
        %v1789 = vunpack.c.l.s4 1983009808
        %v1790 = vunpack.c.0.s8 %v1789
        %v1791 = vlaneseq
        %v1792 = vshrl.u32 %v1791, 7
        %v1793 = vsub.s32 %v1790, %v1792
        %v1794 = vrot.slane %v1786, %v1793
        %v1796 = vunpack.c.l.s4 1983009808
        %v1797 = vunpack.c.0.s8 %v1796
        %v1798 = vlaneseq
        %v1799 = vshrl.u32 %v1798, 7
        %v1800 = vsub.s32 %v1797, %v1799
        %v1801 = vrot.slane %v1787, %v1800
        %v1802 = vcombine.low %v833, %v835
        %v1803 = vcombine.high %v833, %v835
        %v1805 = vunpack.c.l.s4 1983009808
        %v1806 = vunpack.c.0.s8 %v1805
        %v1807 = vlaneseq
        %v1808 = vshrl.u32 %v1807, 7
        %v1809 = vsub.s32 %v1806, %v1808
        %v1810 = vrot.slane %v1802, %v1809
        %v1812 = vunpack.c.l.s4 1983009808
        %v1813 = vunpack.c.0.s8 %v1812
        %v1814 = vlaneseq
        %v1815 = vshrl.u32 %v1814, 7
        %v1816 = vsub.s32 %v1813, %v1815
        %v1817 = vrot.slane %v1803, %v1816
        %v1818 = vcombine.low %v834, %v836
        %v1819 = vcombine.high %v834, %v836
        %v1821 = vunpack.c.l.s4 1983009808
        %v1822 = vunpack.c.0.s8 %v1821
        %v1823 = vlaneseq
        %v1824 = vshrl.u32 %v1823, 7
        %v1825 = vsub.s32 %v1822, %v1824
        %v1826 = vrot.slane %v1818, %v1825
        %v1828 = vunpack.c.l.s4 1983009808
        %v1829 = vunpack.c.0.s8 %v1828
        %v1830 = vlaneseq
        %v1831 = vshrl.u32 %v1830, 7
        %v1832 = vsub.s32 %v1829, %v1831
        %v1833 = vrot.slane %v1819, %v1832
        %v1834 = vcombine.low %v1778, %v1794
        %v1835 = vcombine.high %v1778, %v1794
        %v1837 = vunpack.c.l.s4 1934713408
        %v1838 = vunpack.c.0.s8 %v1837
        %v1839 = vlaneseq
        %v1840 = vshrl.u32 %v1839, 7
        %v1841 = vsub.s32 %v1838, %v1840
        %v1842 = vrot.slane %v1834, %v1841
        %v1844 = vunpack.c.l.s4 1934713408
        %v1845 = vunpack.c.0.s8 %v1844
        %v1846 = vlaneseq
        %v1847 = vshrl.u32 %v1846, 7
        %v1848 = vsub.s32 %v1845, %v1847
        %v1849 = vrot.slane %v1835, %v1848
        %v1850 = vcombine.low %v1785, %v1801
        %v1852 = vunpack.c.l.s4 1934713408
        %v1853 = vunpack.c.0.s8 %v1852
        %v1854 = vlaneseq
        %v1855 = vshrl.u32 %v1854, 7
        %v1856 = vsub.s32 %v1853, %v1855
        %v1857 = vrot.slane %v1850, %v1856
        %v1858 = vcombine.low %v1810, %v1826
        %v1859 = vcombine.high %v1810, %v1826
        %v1861 = vunpack.c.l.s4 1934713408
        %v1862 = vunpack.c.0.s8 %v1861
        %v1863 = vlaneseq
        %v1864 = vshrl.u32 %v1863, 7
        %v1865 = vsub.s32 %v1862, %v1864
        %v1866 = vrot.slane %v1858, %v1865
        %v1868 = vunpack.c.l.s4 1934713408
        %v1869 = vunpack.c.0.s8 %v1868
        %v1870 = vlaneseq
        %v1871 = vshrl.u32 %v1870, 7
        %v1872 = vsub.s32 %v1869, %v1871
        %v1873 = vrot.slane %v1859, %v1872
        %v1874 = vcombine.low %v1817, %v1833
        %v1876 = vunpack.c.l.s4 1934713408
        %v1877 = vunpack.c.0.s8 %v1876
        %v1878 = vlaneseq
        %v1879 = vshrl.u32 %v1878, 7
        %v1880 = vsub.s32 %v1877, %v1879
        %v1881 = vrot.slane %v1874, %v1880
        %v1882 = vcombine.low %v1842, %v1866
        %v1883 = vcombine.high %v1842, %v1866
        %v1884 = vcombine.low %v1849, %v1873
        %v1885 = vcombine.high %v1849, %v1873
        %v1886 = vcombine.low %v1857, %v1881
        %v1887 = vcombine.low %v1218, %v1220
        %v1888 = vcombine.high %v1218, %v1220
        %v1890 = vunpack.c.l.s4 1983009808
        %v1891 = vunpack.c.0.s8 %v1890
        %v1892 = vlaneseq
        %v1893 = vshrl.u32 %v1892, 7
        %v1894 = vsub.s32 %v1891, %v1893
        %v1895 = vrot.slane %v1887, %v1894
        %v1897 = vunpack.c.l.s4 1983009808
        %v1898 = vunpack.c.0.s8 %v1897
        %v1899 = vlaneseq
        %v1900 = vshrl.u32 %v1899, 7
        %v1901 = vsub.s32 %v1898, %v1900
        %v1902 = vrot.slane %v1888, %v1901
        %v1903 = vcombine.low %v1219, %v1221
        %v1904 = vcombine.high %v1219, %v1221
        %v1906 = vunpack.c.l.s4 1983009808
        %v1907 = vunpack.c.0.s8 %v1906
        %v1908 = vlaneseq
        %v1909 = vshrl.u32 %v1908, 7
        %v1910 = vsub.s32 %v1907, %v1909
        %v1911 = vrot.slane %v1903, %v1910
        %v1913 = vunpack.c.l.s4 1983009808
        %v1914 = vunpack.c.0.s8 %v1913
        %v1915 = vlaneseq
        %v1916 = vshrl.u32 %v1915, 7
        %v1917 = vsub.s32 %v1914, %v1916
        %v1918 = vrot.slane %v1904, %v1917
        %v1919 = vcombine.low %v1222, %v1224
        %v1920 = vcombine.high %v1222, %v1224
        %v1922 = vunpack.c.l.s4 1983009808
        %v1923 = vunpack.c.0.s8 %v1922
        %v1924 = vlaneseq
        %v1925 = vshrl.u32 %v1924, 7
        %v1926 = vsub.s32 %v1923, %v1925
        %v1927 = vrot.slane %v1919, %v1926
        %v1929 = vunpack.c.l.s4 1983009808
        %v1930 = vunpack.c.0.s8 %v1929
        %v1931 = vlaneseq
        %v1932 = vshrl.u32 %v1931, 7
        %v1933 = vsub.s32 %v1930, %v1932
        %v1934 = vrot.slane %v1920, %v1933
        %v1935 = vcombine.low %v1223, %v1225
        %v1936 = vcombine.high %v1223, %v1225
        %v1938 = vunpack.c.l.s4 1983009808
        %v1939 = vunpack.c.0.s8 %v1938
        %v1940 = vlaneseq
        %v1941 = vshrl.u32 %v1940, 7
        %v1942 = vsub.s32 %v1939, %v1941
        %v1943 = vrot.slane %v1935, %v1942
        %v1945 = vunpack.c.l.s4 1983009808
        %v1946 = vunpack.c.0.s8 %v1945
        %v1947 = vlaneseq
        %v1948 = vshrl.u32 %v1947, 7
        %v1949 = vsub.s32 %v1946, %v1948
        %v1950 = vrot.slane %v1936, %v1949
        %v1951 = vcombine.low %v1895, %v1911
        %v1952 = vcombine.high %v1895, %v1911
        %v1954 = vunpack.c.l.s4 1934713408
        %v1955 = vunpack.c.0.s8 %v1954
        %v1956 = vlaneseq
        %v1957 = vshrl.u32 %v1956, 7
        %v1958 = vsub.s32 %v1955, %v1957
        %v1959 = vrot.slane %v1951, %v1958
        %v1961 = vunpack.c.l.s4 1934713408
        %v1962 = vunpack.c.0.s8 %v1961
        %v1963 = vlaneseq
        %v1964 = vshrl.u32 %v1963, 7
        %v1965 = vsub.s32 %v1962, %v1964
        %v1966 = vrot.slane %v1952, %v1965
        %v1967 = vcombine.low %v1902, %v1918
        %v1969 = vunpack.c.l.s4 1934713408
        %v1970 = vunpack.c.0.s8 %v1969
        %v1971 = vlaneseq
        %v1972 = vshrl.u32 %v1971, 7
        %v1973 = vsub.s32 %v1970, %v1972
        %v1974 = vrot.slane %v1967, %v1973
        %v1975 = vcombine.low %v1927, %v1943
        %v1976 = vcombine.high %v1927, %v1943
        %v1978 = vunpack.c.l.s4 1934713408
        %v1979 = vunpack.c.0.s8 %v1978
        %v1980 = vlaneseq
        %v1981 = vshrl.u32 %v1980, 7
        %v1982 = vsub.s32 %v1979, %v1981
        %v1983 = vrot.slane %v1975, %v1982
        %v1985 = vunpack.c.l.s4 1934713408
        %v1986 = vunpack.c.0.s8 %v1985
        %v1987 = vlaneseq
        %v1988 = vshrl.u32 %v1987, 7
        %v1989 = vsub.s32 %v1986, %v1988
        %v1990 = vrot.slane %v1976, %v1989
        %v1991 = vcombine.low %v1934, %v1950
        %v1993 = vunpack.c.l.s4 1934713408
        %v1994 = vunpack.c.0.s8 %v1993
        %v1995 = vlaneseq
        %v1996 = vshrl.u32 %v1995, 7
        %v1997 = vsub.s32 %v1994, %v1996
        %v1998 = vrot.slane %v1991, %v1997
        %v1999 = vcombine.low %v1959, %v1983
        %v2000 = vcombine.high %v1959, %v1983
        %v2001 = vcombine.low %v1966, %v1990
        %v2002 = vcombine.high %v1966, %v1990
        %v2003 = vcombine.low %v1974, %v1998
        %v2004 = vld [vmem:[#allocation7] sm:$0xf]
        %v2006 = vsel %vm240, %v1354, 0
        %v2009 = vsel %vm240, %v1490, 0
        %v2012 = vsel %vm240, %v1355, 0
        %v2015 = vsel %vm240, %v1491, 0
        %v2018 = vsel %vm240, %v1356, 0
        %v2021 = vsel %vm240, %v1492, 0
        %v2024 = vsel %vm240, %v1357, 0
        %v2027 = vsel %vm240, %v1493, 0
        %v2030 = vsel %vm240, %v1358, 0
        %v2033 = vsel %vm240, %v1494, 0
        %v2036 = vsel %vm240, %v1359, 0
        %v2039 = vsel %vm240, %v1495, 0
        %v2042 = vsel %vm240, %v1360, 0
        %v2045 = vsel %vm240, %v1496, 0
        %v2048 = vsel %vm240, %v1361, 0
        %v2051 = vsel %vm240, %v1497, 0
        %v2054 = vsel %vm240, %v1626, 0
        %v2057 = vsel %vm240, %v1762, 0
        %v2060 = vsel %vm240, %v1627, 0
        %v2063 = vsel %vm240, %v1763, 0
        %v2066 = vsel %vm240, %v1628, 0
        %v2069 = vsel %vm240, %v1764, 0
        %v2072 = vsel %vm240, %v1629, 0
        %v2075 = vsel %vm240, %v1765, 0
        %v2078 = vsel %vm240, %v1630, 0
        %v2081 = vsel %vm240, %v1766, 0
        %v2084 = vsel %vm240, %v1631, 0
        %v2087 = vsel %vm240, %v1767, 0
        %v2090 = vsel %vm240, %v1632, 0
        %v2093 = vsel %vm240, %v1768, 0
        %v2096 = vsel %vm240, %v1633, 0
        %v2099 = vsel %vm240, %v1769, 0
        %v2102 = vsel %vm240, %v1882, 0
        %v2105 = vsel %vm240, %v1999, 0
        %v2108 = vsel %vm240, %v1883, 0
        %v2111 = vsel %vm240, %v2000, 0
        %v2114 = vsel %vm240, %v1884, 0
        %v2117 = vsel %vm240, %v2001, 0
        %v2120 = vsel %vm240, %v1885, 0
        %v2123 = vsel %vm240, %v2002, 0
        %v2126 = vsel %vm240, %v1886, 0
        %v2129 = vsel %vm240, %v2003, 0
        %v2132 = vsel %vm247, %v2004, 0
        %2134 = vmatprep.subr.mxu0 0.0
        %2135 = vmatpush1.msra.mxu0 %v2132
        %2136 = vmatprep.subr.mxu0 0.0
        %2137 = vmatpush1.msra.mxu0 0.0
        %2138 = vmatprep.subr.mxu0 0.0
        %2139 = vmatpush1.msra.mxu0 0.0
        %2140 = vmatprep.subr.mxu0 0.0
        %2141 = vmatpush1.msra.mxu0 0.0
        %2142 = vmatprep.subr.mxu0 0.0
        %2143 = vmatpush1.msra.mxu0 0.0
        %2144 = vmatprep.subr.mxu0 0.0
        %2145 = vmatpush1.msra.mxu0 0.0
        %2146 = vmatprep.subr.mxu0 0.0
        %2147 = vmatpush1.msra.mxu0 0.0
        %2148 = vmatprep.subr.mxu0 0.0
        %2149 = vmatpush1.msra.mxu0 0.0
        %2150 = vmatprep.subr.mxu0 0.0
        %2151 = vmatpush1.msra.mxu0 0.0
        %2152 = vmatprep.subr.mxu0 0.0
        %2153 = vmatpush1.msra.mxu0 0.0
        %2154 = vmatprep.subr.mxu0 0.0
        %2155 = vmatpush1.msra.mxu0 0.0
        %2156 = vmatprep.subr.mxu0 0.0
        %2157 = vmatpush1.msra.mxu0 0.0
        %2158 = vmatprep.subr.mxu0 0.0
        %2159 = vmatpush1.msra.mxu0 0.0
        %2160 = vmatprep.subr.mxu0 0.0
        %2161 = vmatpush1.msra.mxu0 0.0
        %2162 = vmatprep.subr.mxu0 0.0
        %2163 = vmatpush1.msra.mxu0 0.0
        %2164 = vmatprep.subr.mxu0 0.0
        %2165 = vmatpush1.msra.mxu0 0.0
        %2166 = vmatprep.subr.mxu0 0.0
        %2167 = vmatpush1.msra.mxu0 0.0
        %2168 = vmatprep.subr.mxu0 0.0
        %2169 = vmatpush1.msra.mxu0 0.0
        %2170 = vmatprep.subr.mxu0 0.0
        %2171 = vmatpush1.msra.mxu0 0.0
        %2172 = vmatprep.subr.mxu0 0.0
        %2173 = vmatpush1.msra.mxu0 0.0
        %2174 = vmatprep.subr.mxu0 0.0
        %2175 = vmatpush1.msra.mxu0 0.0
        %2176 = vmatprep.subr.mxu0 0.0
        %2177 = vmatpush1.msra.mxu0 0.0
        %2178 = vmatprep.subr.mxu0 0.0
        %2179 = vmatpush1.msra.mxu0 0.0
        %2180 = vmatprep.subr.mxu0 0.0
        %2181 = vmatpush1.msra.mxu0 0.0
        %2182 = vmatprep.subr.mxu0 0.0
        %2183 = vmatpush1.msra.mxu0 0.0
        %2184 = vmatprep.subr.mxu0 0.0
        %2185 = vmatpush1.msra.mxu0 0.0
        %2186 = vmatprep.subr.mxu0 0.0
        %2187 = vmatpush1.msra.mxu0 0.0
        %2188 = vmatprep.subr.mxu0 0.0
        %2189 = vmatpush1.msra.mxu0 0.0
        %2190 = vmatprep.subr.mxu0 0.0
        %2191 = vmatpush1.msra.mxu0 0.0
        %2192 = vmatprep.subr.mxu0 0.0
        %2193 = vmatpush1.msra.mxu0 0.0
        %2194 = vmatprep.subr.mxu0 0.0
        %2195 = vmatpush1.msra.mxu0 0.0
        %2196 = vmatprep.subr.mxu0 0.0
        %2197 = vmatpush1.msra.mxu0 0.0
        %2198 = vmatprep.mubr.f32.mxu0 0.0
        %2199 = vmatmul.mubr.f32.gmra.mrb[0].mxu0 %v2006
        %v2200 = vpop.f32.mrb[0].mxu0
        %v2201 = vadd.f32 0.0, %v2200
        %v2202 = vpop.f32.mrb[0].mxu0
        %2203 = vmatprep.mubr.f32.mxu0 0.0
        %2204 = vmatmul.mubr.f32.gmra.mrb[0].mxu0 %v2009
        %v2205 = vpop.f32.mrb[0].mxu0
        %v2206 = vadd.f32 0.0, %v2205
        %v2207 = vpop.f32.mrb[0].mxu0
        %2208 = vmatprep.mubr.f32.mxu0 0.0
        %2209 = vmatmul.mubr.f32.gmra.mrb[0].mxu0 %v2012
        %v2210 = vpop.f32.mrb[0].mxu0
        %v2211 = vadd.f32 0.0, %v2210
        %v2212 = vpop.f32.mrb[0].mxu0
        %2213 = vmatprep.mubr.f32.mxu0 0.0
        %2214 = vmatmul.mubr.f32.gmra.mrb[0].mxu0 %v2015
        %v2215 = vpop.f32.mrb[0].mxu0
        %v2216 = vadd.f32 0.0, %v2215
        %v2217 = vpop.f32.mrb[0].mxu0
        %2218 = vmatprep.mubr.f32.mxu0 0.0
        %2219 = vmatmul.mubr.f32.gmra.mrb[0].mxu0 %v2018
        %v2220 = vpop.f32.mrb[0].mxu0
        %v2221 = vadd.f32 0.0, %v2220
        %v2222 = vpop.f32.mrb[0].mxu0
        %2223 = vmatprep.mubr.f32.mxu0 0.0
        %2224 = vmatmul.mubr.f32.gmra.mrb[0].mxu0 %v2021
        %v2225 = vpop.f32.mrb[0].mxu0
        %v2226 = vadd.f32 0.0, %v2225
        %v2227 = vpop.f32.mrb[0].mxu0
        %2228 = vmatprep.mubr.f32.mxu0 0.0
        %2229 = vmatmul.mubr.f32.gmra.mrb[0].mxu0 %v2024
        %v2230 = vpop.f32.mrb[0].mxu0
        %v2231 = vadd.f32 0.0, %v2230
        %v2232 = vpop.f32.mrb[0].mxu0
        %2233 = vmatprep.mubr.f32.mxu0 0.0
        %2234 = vmatmul.mubr.f32.gmra.mrb[0].mxu0 %v2027
        %v2235 = vpop.f32.mrb[0].mxu0
        %v2236 = vadd.f32 0.0, %v2235
        %v2237 = vpop.f32.mrb[0].mxu0
        %2238 = vmatprep.mubr.f32.mxu0 0.0
        %2239 = vmatmul.mubr.f32.gmra.mrb[0].mxu0 %v2030
        %v2240 = vpop.f32.mrb[0].mxu0
        %v2241 = vadd.f32 0.0, %v2240
        %v2242 = vpop.f32.mrb[0].mxu0
        %2243 = vmatprep.mubr.f32.mxu0 0.0
        %2244 = vmatmul.mubr.f32.gmra.mrb[0].mxu0 %v2033
        %v2245 = vpop.f32.mrb[0].mxu0
        %v2246 = vadd.f32 0.0, %v2245
        %v2247 = vpop.f32.mrb[0].mxu0
        %2248 = vmatprep.mubr.f32.mxu0 0.0
        %2249 = vmatmul.mubr.f32.gmra.mrb[0].mxu0 %v2036
        %v2250 = vpop.f32.mrb[0].mxu0
        %v2251 = vadd.f32 0.0, %v2250
        %v2252 = vpop.f32.mrb[0].mxu0
        %2253 = vmatprep.mubr.f32.mxu0 0.0
        %2254 = vmatmul.mubr.f32.gmra.mrb[0].mxu0 %v2039
        %v2255 = vpop.f32.mrb[0].mxu0
        %v2256 = vadd.f32 0.0, %v2255
        %v2257 = vpop.f32.mrb[0].mxu0
        %2258 = vmatprep.mubr.f32.mxu0 0.0
        %2259 = vmatmul.mubr.f32.gmra.mrb[0].mxu0 %v2042
        %v2260 = vpop.f32.mrb[0].mxu0
        %v2261 = vadd.f32 0.0, %v2260
        %v2262 = vpop.f32.mrb[0].mxu0
        %2263 = vmatprep.mubr.f32.mxu0 0.0
        %2264 = vmatmul.mubr.f32.gmra.mrb[0].mxu0 %v2045
        %v2265 = vpop.f32.mrb[0].mxu0
        %v2266 = vadd.f32 0.0, %v2265
        %v2267 = vpop.f32.mrb[0].mxu0
        %2268 = vmatprep.mubr.f32.mxu0 0.0
        %2269 = vmatmul.mubr.f32.gmra.mrb[0].mxu0 %v2048
        %v2270 = vpop.f32.mrb[0].mxu0
        %v2271 = vadd.f32 0.0, %v2270
        %v2272 = vpop.f32.mrb[0].mxu0
        %2273 = vmatprep.mubr.f32.mxu0 0.0
        %2274 = vmatmul.mubr.f32.gmra.mrb[0].mxu0 %v2051
        %v2275 = vpop.f32.mrb[0].mxu0
        %v2276 = vadd.f32 0.0, %v2275
        %v2277 = vpop.f32.mrb[0].mxu0
        %2278 = vmatprep.mubr.f32.mxu0 0.0
        %2279 = vmatmul.mubr.f32.gmra.mrb[0].mxu0 %v2054
        %v2280 = vpop.f32.mrb[0].mxu0
        %v2281 = vadd.f32 0.0, %v2280
        %v2282 = vpop.f32.mrb[0].mxu0
        %2283 = vmatprep.mubr.f32.mxu0 0.0
        %2284 = vmatmul.mubr.f32.gmra.mrb[0].mxu0 %v2057
        %v2285 = vpop.f32.mrb[0].mxu0
        %v2286 = vadd.f32 0.0, %v2285
        %v2287 = vpop.f32.mrb[0].mxu0
        %2288 = vmatprep.mubr.f32.mxu0 0.0
        %2289 = vmatmul.mubr.f32.gmra.mrb[0].mxu0 %v2060
        %v2290 = vpop.f32.mrb[0].mxu0
        %v2291 = vadd.f32 0.0, %v2290
        %v2292 = vpop.f32.mrb[0].mxu0
        %2293 = vmatprep.mubr.f32.mxu0 0.0
        %2294 = vmatmul.mubr.f32.gmra.mrb[0].mxu0 %v2063
        %v2295 = vpop.f32.mrb[0].mxu0
        %v2296 = vadd.f32 0.0, %v2295
        %v2297 = vpop.f32.mrb[0].mxu0
        %2298 = vmatprep.mubr.f32.mxu0 0.0
        %2299 = vmatmul.mubr.f32.gmra.mrb[0].mxu0 %v2066
        %v2300 = vpop.f32.mrb[0].mxu0
        %v2301 = vadd.f32 0.0, %v2300
        %v2302 = vpop.f32.mrb[0].mxu0
        %2303 = vmatprep.mubr.f32.mxu0 0.0
        %2304 = vmatmul.mubr.f32.gmra.mrb[0].mxu0 %v2069
        %v2305 = vpop.f32.mrb[0].mxu0
        %v2306 = vadd.f32 0.0, %v2305
        %v2307 = vpop.f32.mrb[0].mxu0
        %2308 = vmatprep.mubr.f32.mxu0 0.0
        %2309 = vmatmul.mubr.f32.gmra.mrb[0].mxu0 %v2072
        %v2310 = vpop.f32.mrb[0].mxu0
        %v2311 = vadd.f32 0.0, %v2310
        %v2312 = vpop.f32.mrb[0].mxu0
        %2313 = vmatprep.mubr.f32.mxu0 0.0
        %2314 = vmatmul.mubr.f32.gmra.mrb[0].mxu0 %v2075
        %v2315 = vpop.f32.mrb[0].mxu0
        %v2316 = vadd.f32 0.0, %v2315
        %v2317 = vpop.f32.mrb[0].mxu0
        %2318 = vmatprep.mubr.f32.mxu0 0.0
        %2319 = vmatmul.mubr.f32.gmra.mrb[0].mxu0 %v2078
        %v2320 = vpop.f32.mrb[0].mxu0
        %v2321 = vadd.f32 0.0, %v2320
        %v2322 = vpop.f32.mrb[0].mxu0
        %2323 = vmatprep.mubr.f32.mxu0 0.0
        %2324 = vmatmul.mubr.f32.gmra.mrb[0].mxu0 %v2081
        %v2325 = vpop.f32.mrb[0].mxu0
        %v2326 = vadd.f32 0.0, %v2325
        %v2327 = vpop.f32.mrb[0].mxu0
        %2328 = vmatprep.mubr.f32.mxu0 0.0
        %2329 = vmatmul.mubr.f32.gmra.mrb[0].mxu0 %v2084
        %v2330 = vpop.f32.mrb[0].mxu0
        %v2331 = vadd.f32 0.0, %v2330
        %v2332 = vpop.f32.mrb[0].mxu0
        %2333 = vmatprep.mubr.f32.mxu0 0.0
        %2334 = vmatmul.mubr.f32.gmra.mrb[0].mxu0 %v2087
        %v2335 = vpop.f32.mrb[0].mxu0
        %v2336 = vadd.f32 0.0, %v2335
        %v2337 = vpop.f32.mrb[0].mxu0
        %2338 = vmatprep.mubr.f32.mxu0 0.0
        %2339 = vmatmul.mubr.f32.gmra.mrb[0].mxu0 %v2090
        %v2340 = vpop.f32.mrb[0].mxu0
        %v2341 = vadd.f32 0.0, %v2340
        %v2342 = vpop.f32.mrb[0].mxu0
        %2343 = vmatprep.mubr.f32.mxu0 0.0
        %2344 = vmatmul.mubr.f32.gmra.mrb[0].mxu0 %v2093
        %v2345 = vpop.f32.mrb[0].mxu0
        %v2346 = vadd.f32 0.0, %v2345
        %v2347 = vpop.f32.mrb[0].mxu0
        %2348 = vmatprep.mubr.f32.mxu0 0.0
        %2349 = vmatmul.mubr.f32.gmra.mrb[0].mxu0 %v2096
        %v2350 = vpop.f32.mrb[0].mxu0
        %v2351 = vadd.f32 0.0, %v2350
        %v2352 = vpop.f32.mrb[0].mxu0
        %2353 = vmatprep.mubr.f32.mxu0 0.0
        %2354 = vmatmul.mubr.f32.gmra.mrb[0].mxu0 %v2099
        %v2355 = vpop.f32.mrb[0].mxu0
        %v2356 = vadd.f32 0.0, %v2355
        %v2357 = vpop.f32.mrb[0].mxu0
        %2358 = vmatprep.mubr.f32.mxu0 0.0
        %2359 = vmatmul.mubr.f32.gmra.mrb[0].mxu0 %v2102
        %v2360 = vpop.f32.mrb[0].mxu0
        %v2361 = vadd.f32 0.0, %v2360
        %v2362 = vpop.f32.mrb[0].mxu0
        %2363 = vmatprep.mubr.f32.mxu0 0.0
        %2364 = vmatmul.mubr.f32.gmra.mrb[0].mxu0 %v2105
        %v2365 = vpop.f32.mrb[0].mxu0
        %v2366 = vadd.f32 0.0, %v2365
        %v2367 = vpop.f32.mrb[0].mxu0
        %2368 = vmatprep.mubr.f32.mxu0 0.0
        %2369 = vmatmul.mubr.f32.gmra.mrb[0].mxu0 %v2108
        %v2370 = vpop.f32.mrb[0].mxu0
        %v2371 = vadd.f32 0.0, %v2370
        %v2372 = vpop.f32.mrb[0].mxu0
        %2373 = vmatprep.mubr.f32.mxu0 0.0
        %2374 = vmatmul.mubr.f32.gmra.mrb[0].mxu0 %v2111
        %v2375 = vpop.f32.mrb[0].mxu0
        %v2376 = vadd.f32 0.0, %v2375
        %v2377 = vpop.f32.mrb[0].mxu0
        %2378 = vmatprep.mubr.f32.mxu0 0.0
        %2379 = vmatmul.mubr.f32.gmra.mrb[0].mxu0 %v2114
        %v2380 = vpop.f32.mrb[0].mxu0
        %v2381 = vadd.f32 0.0, %v2380
        %v2382 = vpop.f32.mrb[0].mxu0
        %2383 = vmatprep.mubr.f32.mxu0 0.0
        %2384 = vmatmul.mubr.f32.gmra.mrb[0].mxu0 %v2117
        %v2385 = vpop.f32.mrb[0].mxu0
        %v2386 = vadd.f32 0.0, %v2385
        %v2387 = vpop.f32.mrb[0].mxu0
        %2388 = vmatprep.mubr.f32.mxu0 0.0
        %2389 = vmatmul.mubr.f32.gmra.mrb[0].mxu0 %v2120
        %v2390 = vpop.f32.mrb[0].mxu0
        %v2391 = vadd.f32 0.0, %v2390
        %v2392 = vpop.f32.mrb[0].mxu0
        %2393 = vmatprep.mubr.f32.mxu0 0.0
        %2394 = vmatmul.mubr.f32.gmra.mrb[0].mxu0 %v2123
        %v2395 = vpop.f32.mrb[0].mxu0
        %v2396 = vadd.f32 0.0, %v2395
        %v2397 = vpop.f32.mrb[0].mxu0
        %2398 = vmatprep.mubr.f32.mxu0 0.0
        %2399 = vmatmul.mubr.f32.gmra.mrb[0].mxu0 %v2126
        %v2400 = vpop.f32.mrb[0].mxu0
        %v2401 = vadd.f32 0.0, %v2400
        %v2402 = vpop.f32.mrb[0].mxu0
        %2403 = vmatprep.mubr.f32.mxu0 0.0
        %2404 = vmatmul.mubr.f32.gmra.mrb[0].mxu0 %v2129
        %v2405 = vpop.f32.mrb[0].mxu0
        %v2406 = vadd.f32 0.0, %v2405
        %v2407 = vpop.f32.mrb[0].mxu0
        %2408 = vdwg.mxu0
        %vm2409 = vcmask 130048
        %2410 = vst.msk [vmem:[%s234] sm:$0xff] %vm2409, %v2201
        %2411 = vst.msk [vmem:[%s234 + $0x8] sm:$0xff] %vm2409, %v2206
        %2412 = vst.msk [vmem:[%s234 + $0x10] sm:$0xff] %vm2409, %v2211
        %2413 = vst.msk [vmem:[%s234 + $0x18] sm:$0xff] %vm2409, %v2216
        %2414 = vst.msk [vmem:[%s234 + $0x20] sm:$0xff] %vm2409, %v2221
        %2415 = vst.msk [vmem:[%s234 + $0x28] sm:$0xff] %vm2409, %v2226
        %2416 = vst.msk [vmem:[%s234 + $0x30] sm:$0xff] %vm2409, %v2231
        %2417 = vst.msk [vmem:[%s234 + $0x38] sm:$0xff] %vm2409, %v2236
        %2418 = vst.msk [vmem:[%s234 + $0x40] sm:$0xff] %vm2409, %v2241
        %2419 = vst.msk [vmem:[%s234 + $0x48] sm:$0xff] %vm2409, %v2246
        %2420 = vst.msk [vmem:[%s234 + $0x50] sm:$0xff] %vm2409, %v2251
        %2421 = vst.msk [vmem:[%s234 + $0x58] sm:$0xff] %vm2409, %v2256
        %2422 = vst.msk [vmem:[%s234 + $0x60] sm:$0xff] %vm2409, %v2261
        %2423 = vst.msk [vmem:[%s234 + $0x68] sm:$0xff] %vm2409, %v2266
        %2424 = vst.msk [vmem:[%s234 + $0x70] sm:$0xff] %vm2409, %v2271
        %2425 = vst.msk [vmem:[%s234 + $0x78] sm:$0xff] %vm2409, %v2276
        %2426 = vst.msk [vmem:[%s234 + $0x80] sm:$0xff] %vm2409, %v2281
        %2427 = vst.msk [vmem:[%s234 + $0x88] sm:$0xff] %vm2409, %v2286
        %2428 = vst.msk [vmem:[%s234 + $0x90] sm:$0xff] %vm2409, %v2291
        %2429 = vst.msk [vmem:[%s234 + $0x98] sm:$0xff] %vm2409, %v2296
        %2430 = vst.msk [vmem:[%s234 + $0xa0] sm:$0xff] %vm2409, %v2301
        %2431 = vst.msk [vmem:[%s234 + $0xa8] sm:$0xff] %vm2409, %v2306
        %2432 = vst.msk [vmem:[%s234 + $0xb0] sm:$0xff] %vm2409, %v2311
        %2433 = vst.msk [vmem:[%s234 + $0xb8] sm:$0xff] %vm2409, %v2316
        %2434 = vst.msk [vmem:[%s234 + $0xc0] sm:$0xff] %vm2409, %v2321
        %2435 = vst.msk [vmem:[%s234 + $0xc8] sm:$0xff] %vm2409, %v2326
        %2436 = vst.msk [vmem:[%s234 + $0xd0] sm:$0xff] %vm2409, %v2331
        %2437 = vst.msk [vmem:[%s234 + $0xd8] sm:$0xff] %vm2409, %v2336
        %2438 = vst.msk [vmem:[%s234 + $0xe0] sm:$0xff] %vm2409, %v2341
        %2439 = vst.msk [vmem:[%s234 + $0xe8] sm:$0xff] %vm2409, %v2346
        %2440 = vst.msk [vmem:[%s234 + $0xf0] sm:$0xff] %vm2409, %v2351
        %2441 = vst.msk [vmem:[%s234 + $0xf8] sm:$0xff] %vm2409, %v2356
        %2442 = vst.msk [vmem:[%s234 + $0x100] sm:$0xff] %vm2409, %v2361
        %2443 = vst.msk [vmem:[%s234 + $0x108] sm:$0xff] %vm2409, %v2366
        %2444 = vst.msk [vmem:[%s234 + $0x110] sm:$0xff] %vm2409, %v2371
        %2445 = vst.msk [vmem:[%s234 + $0x118] sm:$0xff] %vm2409, %v2376
        %2446 = vst.msk [vmem:[%s234 + $0x120] sm:$0xff] %vm2409, %v2381
        %2447 = vst.msk [vmem:[%s234 + $0x128] sm:$0xff] %vm2409, %v2386
        %2448 = vst.msk [vmem:[%s234 + $0x130] sm:$0xff] %vm2409, %v2391
        %2449 = vst.msk [vmem:[%s234 + $0x138] sm:$0xff] %vm2409, %v2396
        %2450 = vst.msk [vmem:[%s234 + $0x140] sm:$0xff] %vm2409, %v2401
        %2451 = vst.msk [vmem:[%s234 + $0x148] sm:$0xff] %vm2409, %v2406
        %s2452 = sand.u32 %s116, 1
        %s2453 = scalar_lea.sflag [#allocation4], %s2452
        %s2454 = sand.u32 %s116, 1
        %s2455 = smul.addr %s2454, 336
        %s2456 = scalar_lea.vmem [#allocation8], %s2455
        // Predicated region
        $region45: #{simple_segmentation_decoder.3} parent=31 // pred_check
          %p2457 = pneg %p126
        $region46: #{simple_segmentation_decoder.3} parent=31 // pred_check_branch
          %2459 = sbr.rel (%p2457) target = $region48
        $region47: #{simple_segmentation_decoder.3} parent=31 // pred_region
          %s2460 = smul.u32 2, %s26
          %s2462 = ssub.s32 5376, 5376
          %2463 = vsyncadd %s2453, %s2462
          %s2464 = smul.addr %s25, 42
          %s2465 = sadd.s32 %s2460, %s2464
          %s2466 = smul.addr %s2465, 128
          %s2467 = scalar_lea.hbm %s3, %s2466
          %s2468 = sshll.u32 %s2456, 4
          %s2469 = int_to_ptr.vmem [resolvable:$true] %s2468
          %2474 = dma.vmem_to_hbm [thread:$0]  %s2469, 5376, %s2467, %s2453, 128, 128, 8
        $region48: #{simple_segmentation_decoder.3} parent=31 // pred_fallthru
          _
      $region32: #{simple_segmentation_decoder.3} parent=5 // pred_fallthru
        _
      %p2475 = scmp.le.s32.totalorder 2, %s16
      // Predicated region
      $region49: #{simple_segmentation_decoder.3} parent=5 // pred_check
        %p2476 = pneg %p2475
      $region50: #{simple_segmentation_decoder.3} parent=5 // pred_check_branch
        %2478 = sbr.rel (%p2476) target = $region52
      $region51: #{simple_segmentation_decoder.3} parent=5 // pred_region
        %s2479 = ssub.s32 %s16, 2
        // Predicated region
        $region53: #{simple_segmentation_decoder.3} parent=51 // pred_check
          %p2480 = pneg %p132
        $region54: #{simple_segmentation_decoder.3} parent=51 // pred_check_branch
          %2482 = sbr.rel (%p2480) target = $region56
        $region55: #{simple_segmentation_decoder.3} parent=51 // pred_region
          %s2483 = sand.u32 %s117, 1
          %s2484 = scalar_lea.sflag [#allocation4], %s2483
          %s2485 = sand.u32 %s117, 1
          %s2486 = smul.addr %s2485, 336
          %s2487 = scalar_lea.vmem [#allocation8], %s2486
          %2488 = dma.done %s2484, 5376
        $region56: #{simple_segmentation_decoder.3} parent=51 // pred_fallthru
          _
      $region52: #{simple_segmentation_decoder.3} parent=5 // pred_fallthru
        _
    $region6: #{simple_segmentation_decoder.3} parent=1 // loop_footer
      %s20 = sadd.s32 1, %s16
    $region7: #{simple_segmentation_decoder.3} parent=1 // loop_footer_branch
      %15 = sbr.rel target = $region3
    $region8: #{simple_segmentation_decoder.3} parent=1 // loop_exit
      _
    %2489 = vsyncpa [#allocation3], 1
    %s2490 = scalar_lea.sflag [#allocation3], 1
    %2491 = vsyncpa %s2490, 1
    %2492 = vsyncpa [#allocation6], 1
    %2493 = vsyncpa [#allocation4], 1
    %s2494 = scalar_lea.sflag [#allocation4], 1
    %2495 = vsyncpa %s2494, 1

</llo_original>
